<compile_context>
chip_gen: v7x
topology: tpu7x:2x2x1
jax: 0.10.0
libtpu: 0.0.40
codegen_flags: <defaults>
</compile_context>

<pallas_src>
import functools

import jax
import jax.numpy as jnp
from jax.experimental import pallas as pl
from jax.experimental.pallas import tpu as pltpu

LN_EPS = 1e-5


def _lstm_head_kernel(x_ref,
                      wih0_ref, whh0_ref, b0_ref,
                      wih1_ref, whh1_ref, b1_ref,
                      gamma_ref, beta_ref,
                      wout_ref, bout_ref,
                      out_ref,
                      h0_seq_ref,
                      *, seq_len, batch, hidden_dim):
    """Full forward pass on VMEM-resident tensors.

    x_ref:       (T*B, D)   time-major, flattened input sequence
    wih*_ref:    (D_or_H, 4H) pre-transposed input->gates weights
    whh*_ref:    (H, 4H)    pre-transposed hidden->gates weights
    b*_ref:      (1, 4H)    combined bias (b_ih + b_hh)
    gamma/beta:  (1, H)     LayerNorm affine params
    wout_ref:    (H, O)     pre-transposed prediction Linear weight
    bout_ref:    (1, O)
    out_ref:     (B, O)
    h0_seq_ref:  (T*B, H)   VMEM scratch holding layer-0 hidden states for all t
    """
    T, B, H = seq_len, batch, hidden_dim

    whh0 = whh0_ref[...]
    whh1 = whh1_ref[...]

    def cell(pre_gates, h, c, w_hh):
        # One matmul per step on the recurrence critical path.
        gates = pre_gates + jnp.dot(h, w_hh, preferred_element_type=jnp.float32)  # (B, 4H)
        # Full 128-lane nonlinearities before slicing (PyTorch gate order i,f,g,o).
        sg = jax.nn.sigmoid(gates)
        tg = jnp.tanh(gates)
        i = sg[:, 0 * H:1 * H]
        f = sg[:, 1 * H:2 * H]
        g = tg[:, 2 * H:3 * H]
        o = sg[:, 3 * H:4 * H]
        c_new = f * c + i * g
        h_new = o * jnp.tanh(c_new)
        return h_new, c_new

    zeros = jnp.zeros((B, H), jnp.float32)

    # ---- Layer 0: hoisted batched input projection, then unrolled recurrence. ----
    xp0 = (jnp.dot(x_ref[...], wih0_ref[...], preferred_element_type=jnp.float32)
           + b0_ref[...])                                      # (T*B, 4H)

    h0, c0 = zeros, zeros
    for t in range(T):                                         # fully unrolled, static slices
        h0, c0 = cell(xp0[t * B:(t + 1) * B, :], h0, c0, whh0)
        h0_seq_ref[t * B:(t + 1) * B, :] = h0
    # TODO(synk): inter-layer LSTM dropout is train-only; eval mode -> identity.

    # ---- Layer 1: hoisted batched input projection, then unrolled recurrence. ----
    xp1 = (jnp.dot(h0_seq_ref[...], wih1_ref[...], preferred_element_type=jnp.float32)
           + b1_ref[...])                                      # (T*B, 4H)

    h1, c1 = zeros, zeros
    for t in range(T):
        h1, c1 = cell(xp1[t * B:(t + 1) * B, :], h1, c1, whh1)

    # hidden_features[:, -1, :] is h1 of the top layer at the last timestep.
    # LayerNorm over the feature dim (biased variance, like nn.LayerNorm).
    mean = jnp.mean(h1, axis=-1, keepdims=True)
    var = jnp.mean((h1 - mean) ** 2, axis=-1, keepdims=True)
    hn = (h1 - mean) * jax.lax.rsqrt(var + LN_EPS)
    hn = hn * gamma_ref[...] + beta_ref[...]

    # activation = ReLU
    hn = jnp.maximum(hn, 0.0)

    # TODO(synk): nn.Dropout in eval mode is identity; train-time masking not modeled.

    # prediction Linear
    y = jnp.dot(hn, wout_ref[...], preferred_element_type=jnp.float32) + bout_ref[...]
    out_ref[...] = y.astype(out_ref.dtype)


def prepare_params(params):
    """One-time parameter prep: transposes, bias fusion, (1, N) lane layout."""
    return {
        "wih0_t": params["w_ih_l0"].T,                                  # (D, 4H)
        "whh0_t": params["w_hh_l0"].T,                                  # (H, 4H)
        "b0": (params["b_ih_l0"] + params["b_hh_l0"])[None, :],         # (1, 4H)
        "wih1_t": params["w_ih_l1"].T,                                  # (H, 4H)
        "whh1_t": params["w_hh_l1"].T,                                  # (H, 4H)
        "b1": (params["b_ih_l1"] + params["b_hh_l1"])[None, :],         # (1, 4H)
        "gamma": params["ln_gamma"][None, :],                           # (1, H)
        "beta": params["ln_beta"][None, :],                             # (1, H)
        "wout_t": params["w_out"].T,                                    # (H, O)
        "bout": params["b_out"][None, :],                               # (1, O)
    }


def time_series_model_forward(x, prepped):
    """x: (B, T, D_in) float32, batch_first like the PyTorch module."""
    B, T, D = x.shape
    H = prepped["whh0_t"].shape[0]
    O = prepped["wout_t"].shape[1]

    # Time-major, flattened to (T*B, D) so the layer-0 input projection is a single
    # batched matmul inside the kernel (no per-step x loads in the recurrence).
    x_tm = jnp.transpose(x, (1, 0, 2)).reshape(T * B, D)

    args = (
        x_tm,
        prepped["wih0_t"], prepped["whh0_t"], prepped["b0"],
        prepped["wih1_t"], prepped["whh1_t"], prepped["b1"],
        prepped["gamma"], prepped["beta"],
        prepped["wout_t"], prepped["bout"],
    )

    vmem = pl.BlockSpec(memory_space=pltpu.MemorySpace.VMEM)
    kernel = functools.partial(_lstm_head_kernel, seq_len=T, batch=B, hidden_dim=H)
    return pl.pallas_call(
        kernel,
        out_shape=jax.ShapeDtypeStruct((B, O), jnp.float32),
        in_specs=[vmem] * len(args),
        out_specs=vmem,
        scratch_shapes=[pltpu.VMEM((T * B, H), jnp.float32)],
    )(*args)


def reference_forward(x, params):
    """Pure-JAX reference matching PyTorch semantics (eval mode)."""
    H = params["w_hh_l0"].shape[1]

    def run_layer(seq, w_ih, w_hh, b_ih, b_hh):
        B = seq.shape[1]

        def cell(carry, xt):
            h, c = carry
            gates = xt @ w_ih.T + b_ih + h @ w_hh.T + b_hh
            i = jax.nn.sigmoid(gates[:, 0 * H:1 * H])
            f = jax.nn.sigmoid(gates[:, 1 * H:2 * H])
            g = jnp.tanh(gates[:, 2 * H:3 * H])
            o = jax.nn.sigmoid(gates[:, 3 * H:4 * H])
            c = f * c + i * g
            h = o * jnp.tanh(c)
            return (h, c), h

        init = (jnp.zeros((B, H)), jnp.zeros((B, H)))
        _, hs = jax.lax.scan(cell, init, seq)
        return hs

    seq = jnp.transpose(x, (1, 0, 2))                   # (T, B, D)
    h0_seq = run_layer(seq, params["w_ih_l0"], params["w_hh_l0"],
                       params["b_ih_l0"], params["b_hh_l0"])
    h1_seq = run_layer(h0_seq, params["w_ih_l1"], params["w_hh_l1"],
                       params["b_ih_l1"], params["b_hh_l1"])
    h = h1_seq[-1]                                      # (B, H) last timestep
    mean = jnp.mean(h, axis=-1, keepdims=True)
    var = jnp.mean((h - mean) ** 2, axis=-1, keepdims=True)
    h = (h - mean) * jax.lax.rsqrt(var + LN_EPS)
    h = h * params["ln_gamma"] + params["ln_beta"]
    h = jnp.maximum(h, 0.0)
    return h @ params["w_out"].T + params["b_out"]


def make_params(key, input_dim, hidden_dim, output_dim):
    ks = jax.random.split(key, 12)
    s = 0.1
    H, D, O = hidden_dim, input_dim, output_dim
    return {
        "w_ih_l0": s * jax.random.normal(ks[0], (4 * H, D), jnp.float32),
        "w_hh_l0": s * jax.random.normal(ks[1], (4 * H, H), jnp.float32),
        "b_ih_l0": s * jax.random.normal(ks[2], (4 * H,), jnp.float32),
        "b_hh_l0": s * jax.random.normal(ks[3], (4 * H,), jnp.float32),
        "w_ih_l1": s * jax.random.normal(ks[4], (4 * H, H), jnp.float32),
        "w_hh_l1": s * jax.random.normal(ks[5], (4 * H, H), jnp.float32),
        "b_ih_l1": s * jax.random.normal(ks[6], (4 * H,), jnp.float32),
        "b_hh_l1": s * jax.random.normal(ks[7], (4 * H,), jnp.float32),
        "ln_gamma": jnp.ones((H,), jnp.float32),
        "ln_beta": jnp.zeros((H,), jnp.float32),
        "w_out": s * jax.random.normal(ks[8], (O, H), jnp.float32),
        "b_out": s * jax.random.normal(ks[9], (O,), jnp.float32),
    }


if __name__ == "__main__":
    B, T, D_IN, HIDDEN, OUT = 2, 8, 4, 32, 8

    key = jax.random.PRNGKey(0)
    k_x, k_p = jax.random.split(key)
    x = jax.random.normal(k_x, (B, T, D_IN), jnp.float32)
    params = make_params(k_p, D_IN, HIDDEN, OUT)
    prepped = prepare_params(params)           # one-time weight prep (transposes, bias fusion)

    out = jax.block_until_ready(time_series_model_forward(x, prepped))
    ref = jax.block_until_ready(reference_forward(x, params))

    assert out.shape == (B, OUT), out.shape
    assert jnp.allclose(out, ref, rtol=1e-4, atol=1e-4), (out, ref)
    print("KERNEL_OK")
</pallas_src>

<mosaic_0001>
module attributes {stable_mosaic.version = 11 : i64} {
  func.func @_lstm_head_kernel(%arg0: memref<16x4xf32, #tpu.memory_space<vmem>>, %arg1: memref<4x128xf32, #tpu.memory_space<vmem>>, %arg2: memref<32x128xf32, #tpu.memory_space<vmem>>, %arg3: memref<1x128xf32, #tpu.memory_space<vmem>>, %arg4: memref<32x128xf32, #tpu.memory_space<vmem>>, %arg5: memref<32x128xf32, #tpu.memory_space<vmem>>, %arg6: memref<1x128xf32, #tpu.memory_space<vmem>>, %arg7: memref<1x32xf32, #tpu.memory_space<vmem>>, %arg8: memref<1x32xf32, #tpu.memory_space<vmem>>, %arg9: memref<32x8xf32, #tpu.memory_space<vmem>>, %arg10: memref<1x8xf32, #tpu.memory_space<vmem>>, %arg11: memref<2x8xf32, #tpu.memory_space<vmem>>, %arg12: memref<16x32xf32, #tpu.memory_space<vmem>>) attributes {dimension_semantics = [], scalar_prefetch = 0 : i64, scratch_operands = 1 : i64, tpu.core_type = #tpu.core_type<tc>} {
    %c0 = arith.constant 0 : index
    %c0_0 = arith.constant 0 : index
    %0 = vector.load %arg2[%c0, %c0_0] : memref<32x128xf32, #tpu.memory_space<vmem>>, vector<32x128xf32>
    %c0_1 = arith.constant 0 : index
    %c0_2 = arith.constant 0 : index
    %1 = vector.load %arg5[%c0_1, %c0_2] : memref<32x128xf32, #tpu.memory_space<vmem>>, vector<32x128xf32>
    %cst = arith.constant 0.000000e+00 : f32
    %2 = vector.broadcast %cst : f32 to vector<2x32xf32>
    %c0_3 = arith.constant 0 : index
    %c0_4 = arith.constant 0 : index
    %3 = vector.load %arg0[%c0_3, %c0_4] : memref<16x4xf32, #tpu.memory_space<vmem>>, vector<16x4xf32>
    %c0_5 = arith.constant 0 : index
    %c0_6 = arith.constant 0 : index
    %4 = vector.load %arg1[%c0_5, %c0_6] : memref<4x128xf32, #tpu.memory_space<vmem>>, vector<4x128xf32>
    %cst_7 = arith.constant dense<0.000000e+00> : vector<16x128xf32>
    %5 = tpu.matmul %3, %4, %cst_7 {dimension_numbers = #tpu.dot_dimension_numbers<[1], [0], [0], [1], [0, 0, 1, 1], [], []>} : vector<16x4xf32>, vector<4x128xf32>, vector<16x128xf32> -> vector<16x128xf32>
    %c0_8 = arith.constant 0 : index
    %c0_9 = arith.constant 0 : index
    %6 = vector.load %arg3[%c0_8, %c0_9] : memref<1x128xf32, #tpu.memory_space<vmem>>, vector<1x128xf32>
    %7 = vector.broadcast %6 : vector<1x128xf32> to vector<16x128xf32>
    %8 = arith.addf %5, %7 : vector<16x128xf32>
    %9 = vector.extract_strided_slice %8 {offsets = [0, 0], sizes = [2, 128], strides = [1, 1]} : vector<16x128xf32> to vector<2x128xf32>
    %cst_10 = arith.constant dense<0.000000e+00> : vector<2x128xf32>
    %10 = tpu.matmul %2, %0, %cst_10 {dimension_numbers = #tpu.dot_dimension_numbers<[1], [0], [0], [1], [0, 0, 1, 1], [], []>} : vector<2x32xf32>, vector<32x128xf32>, vector<2x128xf32> -> vector<2x128xf32>
    %11 = arith.addf %9, %10 : vector<2x128xf32>
    %12 = arith.negf %11 : vector<2x128xf32>
    %13 = math.exp %12 : vector<2x128xf32>
    %cst_11 = arith.constant 1.000000e+00 : f32
    %14 = vector.broadcast %cst_11 : f32 to vector<2x128xf32>
    %15 = arith.addf %14, %13 : vector<2x128xf32>
    %16 = arith.divf %14, %15 : vector<2x128xf32>
    %17 = math.tanh %11 : vector<2x128xf32>
    %18 = vector.extract_strided_slice %16 {offsets = [0, 0], sizes = [2, 32], strides = [1, 1]} : vector<2x128xf32> to vector<2x32xf32>
    %19 = vector.extract_strided_slice %16 {offsets = [0, 32], sizes = [2, 32], strides = [1, 1]} : vector<2x128xf32> to vector<2x32xf32>
    %20 = vector.extract_strided_slice %17 {offsets = [0, 64], sizes = [2, 32], strides = [1, 1]} : vector<2x128xf32> to vector<2x32xf32>
    %21 = vector.extract_strided_slice %16 {offsets = [0, 96], sizes = [2, 32], strides = [1, 1]} : vector<2x128xf32> to vector<2x32xf32>
    %22 = arith.mulf %19, %2 : vector<2x32xf32>
    %23 = arith.mulf %18, %20 : vector<2x32xf32>
    %24 = arith.addf %22, %23 : vector<2x32xf32>
    %25 = math.tanh %24 : vector<2x32xf32>
    %26 = arith.mulf %21, %25 : vector<2x32xf32>
    %c0_12 = arith.constant 0 : index
    %c0_13 = arith.constant 0 : index
    %27 = vector.load %arg12[%c0_12, %c0_13] : memref<16x32xf32, #tpu.memory_space<vmem>>, vector<2x32xf32>
    tpu.vector_store %arg12[%c0_12, %c0_13], %26 {strides = array<i32>} : memref<16x32xf32, #tpu.memory_space<vmem>>, vector<2x32xf32>,
    %28 = vector.extract_strided_slice %8 {offsets = [2, 0], sizes = [2, 128], strides = [1, 1]} : vector<16x128xf32> to vector<2x128xf32>
    %cst_14 = arith.constant dense<0.000000e+00> : vector<2x128xf32>
    %29 = tpu.matmul %26, %0, %cst_14 {dimension_numbers = #tpu.dot_dimension_numbers<[1], [0], [0], [1], [0, 0, 1, 1], [], []>} : vector<2x32xf32>, vector<32x128xf32>, vector<2x128xf32> -> vector<2x128xf32>
    %30 = arith.addf %28, %29 : vector<2x128xf32>
    %31 = arith.negf %30 : vector<2x128xf32>
    %32 = math.exp %31 : vector<2x128xf32>
    %cst_15 = arith.constant 1.000000e+00 : f32
    %33 = vector.broadcast %cst_15 : f32 to vector<2x128xf32>
    %34 = arith.addf %33, %32 : vector<2x128xf32>
    %35 = arith.divf %33, %34 : vector<2x128xf32>
    %36 = math.tanh %30 : vector<2x128xf32>
    %37 = vector.extract_strided_slice %35 {offsets = [0, 0], sizes = [2, 32], strides = [1, 1]} : vector<2x128xf32> to vector<2x32xf32>
    %38 = vector.extract_strided_slice %35 {offsets = [0, 32], sizes = [2, 32], strides = [1, 1]} : vector<2x128xf32> to vector<2x32xf32>
    %39 = vector.extract_strided_slice %36 {offsets = [0, 64], sizes = [2, 32], strides = [1, 1]} : vector<2x128xf32> to vector<2x32xf32>
    %40 = vector.extract_strided_slice %35 {offsets = [0, 96], sizes = [2, 32], strides = [1, 1]} : vector<2x128xf32> to vector<2x32xf32>
    %41 = arith.mulf %38, %24 : vector<2x32xf32>
    %42 = arith.mulf %37, %39 : vector<2x32xf32>
    %43 = arith.addf %41, %42 : vector<2x32xf32>
    %44 = math.tanh %43 : vector<2x32xf32>
    %45 = arith.mulf %40, %44 : vector<2x32xf32>
    %c2 = arith.constant 2 : index
    %c0_16 = arith.constant 0 : index
    %46 = vector.load %arg12[%c2, %c0_16] : memref<16x32xf32, #tpu.memory_space<vmem>>, vector<2x32xf32>
    tpu.vector_store %arg12[%c2, %c0_16], %45 {strides = array<i32>} : memref<16x32xf32, #tpu.memory_space<vmem>>, vector<2x32xf32>,
    %47 = vector.extract_strided_slice %8 {offsets = [4, 0], sizes = [2, 128], strides = [1, 1]} : vector<16x128xf32> to vector<2x128xf32>
    %cst_17 = arith.constant dense<0.000000e+00> : vector<2x128xf32>
    %48 = tpu.matmul %45, %0, %cst_17 {dimension_numbers = #tpu.dot_dimension_numbers<[1], [0], [0], [1], [0, 0, 1, 1], [], []>} : vector<2x32xf32>, vector<32x128xf32>, vector<2x128xf32> -> vector<2x128xf32>
    %49 = arith.addf %47, %48 : vector<2x128xf32>
    %50 = arith.negf %49 : vector<2x128xf32>
    %51 = math.exp %50 : vector<2x128xf32>
    %cst_18 = arith.constant 1.000000e+00 : f32
    %52 = vector.broadcast %cst_18 : f32 to vector<2x128xf32>
    %53 = arith.addf %52, %51 : vector<2x128xf32>
    %54 = arith.divf %52, %53 : vector<2x128xf32>
    %55 = math.tanh %49 : vector<2x128xf32>
    %56 = vector.extract_strided_slice %54 {offsets = [0, 0], sizes = [2, 32], strides = [1, 1]} : vector<2x128xf32> to vector<2x32xf32>
    %57 = vector.extract_strided_slice %54 {offsets = [0, 32], sizes = [2, 32], strides = [1, 1]} : vector<2x128xf32> to vector<2x32xf32>
    %58 = vector.extract_strided_slice %55 {offsets = [0, 64], sizes = [2, 32], strides = [1, 1]} : vector<2x128xf32> to vector<2x32xf32>
    %59 = vector.extract_strided_slice %54 {offsets = [0, 96], sizes = [2, 32], strides = [1, 1]} : vector<2x128xf32> to vector<2x32xf32>
    %60 = arith.mulf %57, %43 : vector<2x32xf32>
    %61 = arith.mulf %56, %58 : vector<2x32xf32>
    %62 = arith.addf %60, %61 : vector<2x32xf32>
    %63 = math.tanh %62 : vector<2x32xf32>
    %64 = arith.mulf %59, %63 : vector<2x32xf32>
    %c4 = arith.constant 4 : index
    %c0_19 = arith.constant 0 : index
    %65 = vector.load %arg12[%c4, %c0_19] : memref<16x32xf32, #tpu.memory_space<vmem>>, vector<2x32xf32>
    tpu.vector_store %arg12[%c4, %c0_19], %64 {strides = array<i32>} : memref<16x32xf32, #tpu.memory_space<vmem>>, vector<2x32xf32>,
    %66 = vector.extract_strided_slice %8 {offsets = [6, 0], sizes = [2, 128], strides = [1, 1]} : vector<16x128xf32> to vector<2x128xf32>
    %cst_20 = arith.constant dense<0.000000e+00> : vector<2x128xf32>
    %67 = tpu.matmul %64, %0, %cst_20 {dimension_numbers = #tpu.dot_dimension_numbers<[1], [0], [0], [1], [0, 0, 1, 1], [], []>} : vector<2x32xf32>, vector<32x128xf32>, vector<2x128xf32> -> vector<2x128xf32>
    %68 = arith.addf %66, %67 : vector<2x128xf32>
    %69 = arith.negf %68 : vector<2x128xf32>
    %70 = math.exp %69 : vector<2x128xf32>
    %cst_21 = arith.constant 1.000000e+00 : f32
    %71 = vector.broadcast %cst_21 : f32 to vector<2x128xf32>
    %72 = arith.addf %71, %70 : vector<2x128xf32>
    %73 = arith.divf %71, %72 : vector<2x128xf32>
    %74 = math.tanh %68 : vector<2x128xf32>
    %75 = vector.extract_strided_slice %73 {offsets = [0, 0], sizes = [2, 32], strides = [1, 1]} : vector<2x128xf32> to vector<2x32xf32>
    %76 = vector.extract_strided_slice %73 {offsets = [0, 32], sizes = [2, 32], strides = [1, 1]} : vector<2x128xf32> to vector<2x32xf32>
    %77 = vector.extract_strided_slice %74 {offsets = [0, 64], sizes = [2, 32], strides = [1, 1]} : vector<2x128xf32> to vector<2x32xf32>
    %78 = vector.extract_strided_slice %73 {offsets = [0, 96], sizes = [2, 32], strides = [1, 1]} : vector<2x128xf32> to vector<2x32xf32>
    %79 = arith.mulf %76, %62 : vector<2x32xf32>
    %80 = arith.mulf %75, %77 : vector<2x32xf32>
    %81 = arith.addf %79, %80 : vector<2x32xf32>
    %82 = math.tanh %81 : vector<2x32xf32>
    %83 = arith.mulf %78, %82 : vector<2x32xf32>
    %c6 = arith.constant 6 : index
    %c0_22 = arith.constant 0 : index
    %84 = vector.load %arg12[%c6, %c0_22] : memref<16x32xf32, #tpu.memory_space<vmem>>, vector<2x32xf32>
    tpu.vector_store %arg12[%c6, %c0_22], %83 {strides = array<i32>} : memref<16x32xf32, #tpu.memory_space<vmem>>, vector<2x32xf32>,
    %85 = vector.extract_strided_slice %8 {offsets = [8, 0], sizes = [2, 128], strides = [1, 1]} : vector<16x128xf32> to vector<2x128xf32>
    %cst_23 = arith.constant dense<0.000000e+00> : vector<2x128xf32>
    %86 = tpu.matmul %83, %0, %cst_23 {dimension_numbers = #tpu.dot_dimension_numbers<[1], [0], [0], [1], [0, 0, 1, 1], [], []>} : vector<2x32xf32>, vector<32x128xf32>, vector<2x128xf32> -> vector<2x128xf32>
    %87 = arith.addf %85, %86 : vector<2x128xf32>
    %88 = arith.negf %87 : vector<2x128xf32>
    %89 = math.exp %88 : vector<2x128xf32>
    %cst_24 = arith.constant 1.000000e+00 : f32
    %90 = vector.broadcast %cst_24 : f32 to vector<2x128xf32>
    %91 = arith.addf %90, %89 : vector<2x128xf32>
    %92 = arith.divf %90, %91 : vector<2x128xf32>
    %93 = math.tanh %87 : vector<2x128xf32>
    %94 = vector.extract_strided_slice %92 {offsets = [0, 0], sizes = [2, 32], strides = [1, 1]} : vector<2x128xf32> to vector<2x32xf32>
    %95 = vector.extract_strided_slice %92 {offsets = [0, 32], sizes = [2, 32], strides = [1, 1]} : vector<2x128xf32> to vector<2x32xf32>
    %96 = vector.extract_strided_slice %93 {offsets = [0, 64], sizes = [2, 32], strides = [1, 1]} : vector<2x128xf32> to vector<2x32xf32>
    %97 = vector.extract_strided_slice %92 {offsets = [0, 96], sizes = [2, 32], strides = [1, 1]} : vector<2x128xf32> to vector<2x32xf32>
    %98 = arith.mulf %95, %81 : vector<2x32xf32>
    %99 = arith.mulf %94, %96 : vector<2x32xf32>
    %100 = arith.addf %98, %99 : vector<2x32xf32>
    %101 = math.tanh %100 : vector<2x32xf32>
    %102 = arith.mulf %97, %101 : vector<2x32xf32>
    %c8 = arith.constant 8 : index
    %c0_25 = arith.constant 0 : index
    %103 = vector.load %arg12[%c8, %c0_25] : memref<16x32xf32, #tpu.memory_space<vmem>>, vector<2x32xf32>
    tpu.vector_store %arg12[%c8, %c0_25], %102 {strides = array<i32>} : memref<16x32xf32, #tpu.memory_space<vmem>>, vector<2x32xf32>,
    %104 = vector.extract_strided_slice %8 {offsets = [10, 0], sizes = [2, 128], strides = [1, 1]} : vector<16x128xf32> to vector<2x128xf32>
    %cst_26 = arith.constant dense<0.000000e+00> : vector<2x128xf32>
    %105 = tpu.matmul %102, %0, %cst_26 {dimension_numbers = #tpu.dot_dimension_numbers<[1], [0], [0], [1], [0, 0, 1, 1], [], []>} : vector<2x32xf32>, vector<32x128xf32>, vector<2x128xf32> -> vector<2x128xf32>
    %106 = arith.addf %104, %105 : vector<2x128xf32>
    %107 = arith.negf %106 : vector<2x128xf32>
    %108 = math.exp %107 : vector<2x128xf32>
    %cst_27 = arith.constant 1.000000e+00 : f32
    %109 = vector.broadcast %cst_27 : f32 to vector<2x128xf32>
    %110 = arith.addf %109, %108 : vector<2x128xf32>
    %111 = arith.divf %109, %110 : vector<2x128xf32>
    %112 = math.tanh %106 : vector<2x128xf32>
    %113 = vector.extract_strided_slice %111 {offsets = [0, 0], sizes = [2, 32], strides = [1, 1]} : vector<2x128xf32> to vector<2x32xf32>
    %114 = vector.extract_strided_slice %111 {offsets = [0, 32], sizes = [2, 32], strides = [1, 1]} : vector<2x128xf32> to vector<2x32xf32>
    %115 = vector.extract_strided_slice %112 {offsets = [0, 64], sizes = [2, 32], strides = [1, 1]} : vector<2x128xf32> to vector<2x32xf32>
    %116 = vector.extract_strided_slice %111 {offsets = [0, 96], sizes = [2, 32], strides = [1, 1]} : vector<2x128xf32> to vector<2x32xf32>
    %117 = arith.mulf %114, %100 : vector<2x32xf32>
    %118 = arith.mulf %113, %115 : vector<2x32xf32>
    %119 = arith.addf %117, %118 : vector<2x32xf32>
    %120 = math.tanh %119 : vector<2x32xf32>
    %121 = arith.mulf %116, %120 : vector<2x32xf32>
    %c10 = arith.constant 10 : index
    %c0_28 = arith.constant 0 : index
    %122 = vector.load %arg12[%c10, %c0_28] : memref<16x32xf32, #tpu.memory_space<vmem>>, vector<2x32xf32>
    tpu.vector_store %arg12[%c10, %c0_28], %121 {strides = array<i32>} : memref<16x32xf32, #tpu.memory_space<vmem>>, vector<2x32xf32>,
    %123 = vector.extract_strided_slice %8 {offsets = [12, 0], sizes = [2, 128], strides = [1, 1]} : vector<16x128xf32> to vector<2x128xf32>
    %cst_29 = arith.constant dense<0.000000e+00> : vector<2x128xf32>
    %124 = tpu.matmul %121, %0, %cst_29 {dimension_numbers = #tpu.dot_dimension_numbers<[1], [0], [0], [1], [0, 0, 1, 1], [], []>} : vector<2x32xf32>, vector<32x128xf32>, vector<2x128xf32> -> vector<2x128xf32>
    %125 = arith.addf %123, %124 : vector<2x128xf32>
    %126 = arith.negf %125 : vector<2x128xf32>
    %127 = math.exp %126 : vector<2x128xf32>
    %cst_30 = arith.constant 1.000000e+00 : f32
    %128 = vector.broadcast %cst_30 : f32 to vector<2x128xf32>
    %129 = arith.addf %128, %127 : vector<2x128xf32>
    %130 = arith.divf %128, %129 : vector<2x128xf32>
    %131 = math.tanh %125 : vector<2x128xf32>
    %132 = vector.extract_strided_slice %130 {offsets = [0, 0], sizes = [2, 32], strides = [1, 1]} : vector<2x128xf32> to vector<2x32xf32>
    %133 = vector.extract_strided_slice %130 {offsets = [0, 32], sizes = [2, 32], strides = [1, 1]} : vector<2x128xf32> to vector<2x32xf32>
    %134 = vector.extract_strided_slice %131 {offsets = [0, 64], sizes = [2, 32], strides = [1, 1]} : vector<2x128xf32> to vector<2x32xf32>
    %135 = vector.extract_strided_slice %130 {offsets = [0, 96], sizes = [2, 32], strides = [1, 1]} : vector<2x128xf32> to vector<2x32xf32>
    %136 = arith.mulf %133, %119 : vector<2x32xf32>
    %137 = arith.mulf %132, %134 : vector<2x32xf32>
    %138 = arith.addf %136, %137 : vector<2x32xf32>
    %139 = math.tanh %138 : vector<2x32xf32>
    %140 = arith.mulf %135, %139 : vector<2x32xf32>
    %c12 = arith.constant 12 : index
    %c0_31 = arith.constant 0 : index
    %141 = vector.load %arg12[%c12, %c0_31] : memref<16x32xf32, #tpu.memory_space<vmem>>, vector<2x32xf32>
    tpu.vector_store %arg12[%c12, %c0_31], %140 {strides = array<i32>} : memref<16x32xf32, #tpu.memory_space<vmem>>, vector<2x32xf32>,
    %142 = vector.extract_strided_slice %8 {offsets = [14, 0], sizes = [2, 128], strides = [1, 1]} : vector<16x128xf32> to vector<2x128xf32>
    %cst_32 = arith.constant dense<0.000000e+00> : vector<2x128xf32>
    %143 = tpu.matmul %140, %0, %cst_32 {dimension_numbers = #tpu.dot_dimension_numbers<[1], [0], [0], [1], [0, 0, 1, 1], [], []>} : vector<2x32xf32>, vector<32x128xf32>, vector<2x128xf32> -> vector<2x128xf32>
    %144 = arith.addf %142, %143 : vector<2x128xf32>
    %145 = arith.negf %144 : vector<2x128xf32>
    %146 = math.exp %145 : vector<2x128xf32>
    %cst_33 = arith.constant 1.000000e+00 : f32
    %147 = vector.broadcast %cst_33 : f32 to vector<2x128xf32>
    %148 = arith.addf %147, %146 : vector<2x128xf32>
    %149 = arith.divf %147, %148 : vector<2x128xf32>
    %150 = math.tanh %144 : vector<2x128xf32>
    %151 = vector.extract_strided_slice %149 {offsets = [0, 0], sizes = [2, 32], strides = [1, 1]} : vector<2x128xf32> to vector<2x32xf32>
    %152 = vector.extract_strided_slice %149 {offsets = [0, 32], sizes = [2, 32], strides = [1, 1]} : vector<2x128xf32> to vector<2x32xf32>
    %153 = vector.extract_strided_slice %150 {offsets = [0, 64], sizes = [2, 32], strides = [1, 1]} : vector<2x128xf32> to vector<2x32xf32>
    %154 = vector.extract_strided_slice %149 {offsets = [0, 96], sizes = [2, 32], strides = [1, 1]} : vector<2x128xf32> to vector<2x32xf32>
    %155 = arith.mulf %152, %138 : vector<2x32xf32>
    %156 = arith.mulf %151, %153 : vector<2x32xf32>
    %157 = arith.addf %155, %156 : vector<2x32xf32>
    %158 = math.tanh %157 : vector<2x32xf32>
    %159 = arith.mulf %154, %158 : vector<2x32xf32>
    %c14 = arith.constant 14 : index
    %c0_34 = arith.constant 0 : index
    %160 = vector.load %arg12[%c14, %c0_34] : memref<16x32xf32, #tpu.memory_space<vmem>>, vector<2x32xf32>
    tpu.vector_store %arg12[%c14, %c0_34], %159 {strides = array<i32>} : memref<16x32xf32, #tpu.memory_space<vmem>>, vector<2x32xf32>,
    %c0_35 = arith.constant 0 : index
    %c0_36 = arith.constant 0 : index
    %161 = vector.load %arg12[%c0_35, %c0_36] : memref<16x32xf32, #tpu.memory_space<vmem>>, vector<16x32xf32>
    %c0_37 = arith.constant 0 : index
    %c0_38 = arith.constant 0 : index
    %162 = vector.load %arg4[%c0_37, %c0_38] : memref<32x128xf32, #tpu.memory_space<vmem>>, vector<32x128xf32>
    %cst_39 = arith.constant dense<0.000000e+00> : vector<16x128xf32>
    %163 = tpu.matmul %161, %162, %cst_39 {dimension_numbers = #tpu.dot_dimension_numbers<[1], [0], [0], [1], [0, 0, 1, 1], [], []>} : vector<16x32xf32>, vector<32x128xf32>, vector<16x128xf32> -> vector<16x128xf32>
    %c0_40 = arith.constant 0 : index
    %c0_41 = arith.constant 0 : index
    %164 = vector.load %arg6[%c0_40, %c0_41] : memref<1x128xf32, #tpu.memory_space<vmem>>, vector<1x128xf32>
    %165 = vector.broadcast %164 : vector<1x128xf32> to vector<16x128xf32>
    %166 = arith.addf %163, %165 : vector<16x128xf32>
    %167 = vector.extract_strided_slice %166 {offsets = [0, 0], sizes = [2, 128], strides = [1, 1]} : vector<16x128xf32> to vector<2x128xf32>
    %cst_42 = arith.constant dense<0.000000e+00> : vector<2x128xf32>
    %168 = tpu.matmul %2, %1, %cst_42 {dimension_numbers = #tpu.dot_dimension_numbers<[1], [0], [0], [1], [0, 0, 1, 1], [], []>} : vector<2x32xf32>, vector<32x128xf32>, vector<2x128xf32> -> vector<2x128xf32>
    %169 = arith.addf %167, %168 : vector<2x128xf32>
    %170 = arith.negf %169 : vector<2x128xf32>
    %171 = math.exp %170 : vector<2x128xf32>
    %cst_43 = arith.constant 1.000000e+00 : f32
    %172 = vector.broadcast %cst_43 : f32 to vector<2x128xf32>
    %173 = arith.addf %172, %171 : vector<2x128xf32>
    %174 = arith.divf %172, %173 : vector<2x128xf32>
    %175 = math.tanh %169 : vector<2x128xf32>
    %176 = vector.extract_strided_slice %174 {offsets = [0, 0], sizes = [2, 32], strides = [1, 1]} : vector<2x128xf32> to vector<2x32xf32>
    %177 = vector.extract_strided_slice %174 {offsets = [0, 32], sizes = [2, 32], strides = [1, 1]} : vector<2x128xf32> to vector<2x32xf32>
    %178 = vector.extract_strided_slice %175 {offsets = [0, 64], sizes = [2, 32], strides = [1, 1]} : vector<2x128xf32> to vector<2x32xf32>
    %179 = vector.extract_strided_slice %174 {offsets = [0, 96], sizes = [2, 32], strides = [1, 1]} : vector<2x128xf32> to vector<2x32xf32>
    %180 = arith.mulf %177, %2 : vector<2x32xf32>
    %181 = arith.mulf %176, %178 : vector<2x32xf32>
    %182 = arith.addf %180, %181 : vector<2x32xf32>
    %183 = math.tanh %182 : vector<2x32xf32>
    %184 = arith.mulf %179, %183 : vector<2x32xf32>
    %185 = vector.extract_strided_slice %166 {offsets = [2, 0], sizes = [2, 128], strides = [1, 1]} : vector<16x128xf32> to vector<2x128xf32>
    %cst_44 = arith.constant dense<0.000000e+00> : vector<2x128xf32>
    %186 = tpu.matmul %184, %1, %cst_44 {dimension_numbers = #tpu.dot_dimension_numbers<[1], [0], [0], [1], [0, 0, 1, 1], [], []>} : vector<2x32xf32>, vector<32x128xf32>, vector<2x128xf32> -> vector<2x128xf32>
    %187 = arith.addf %185, %186 : vector<2x128xf32>
    %188 = arith.negf %187 : vector<2x128xf32>
    %189 = math.exp %188 : vector<2x128xf32>
    %cst_45 = arith.constant 1.000000e+00 : f32
    %190 = vector.broadcast %cst_45 : f32 to vector<2x128xf32>
    %191 = arith.addf %190, %189 : vector<2x128xf32>
    %192 = arith.divf %190, %191 : vector<2x128xf32>
    %193 = math.tanh %187 : vector<2x128xf32>
    %194 = vector.extract_strided_slice %192 {offsets = [0, 0], sizes = [2, 32], strides = [1, 1]} : vector<2x128xf32> to vector<2x32xf32>
    %195 = vector.extract_strided_slice %192 {offsets = [0, 32], sizes = [2, 32], strides = [1, 1]} : vector<2x128xf32> to vector<2x32xf32>
    %196 = vector.extract_strided_slice %193 {offsets = [0, 64], sizes = [2, 32], strides = [1, 1]} : vector<2x128xf32> to vector<2x32xf32>
    %197 = vector.extract_strided_slice %192 {offsets = [0, 96], sizes = [2, 32], strides = [1, 1]} : vector<2x128xf32> to vector<2x32xf32>
    %198 = arith.mulf %195, %182 : vector<2x32xf32>
    %199 = arith.mulf %194, %196 : vector<2x32xf32>
    %200 = arith.addf %198, %199 : vector<2x32xf32>
    %201 = math.tanh %200 : vector<2x32xf32>
    %202 = arith.mulf %197, %201 : vector<2x32xf32>
    %203 = vector.extract_strided_slice %166 {offsets = [4, 0], sizes = [2, 128], strides = [1, 1]} : vector<16x128xf32> to vector<2x128xf32>
    %cst_46 = arith.constant dense<0.000000e+00> : vector<2x128xf32>
    %204 = tpu.matmul %202, %1, %cst_46 {dimension_numbers = #tpu.dot_dimension_numbers<[1], [0], [0], [1], [0, 0, 1, 1], [], []>} : vector<2x32xf32>, vector<32x128xf32>, vector<2x128xf32> -> vector<2x128xf32>
    %205 = arith.addf %203, %204 : vector<2x128xf32>
    %206 = arith.negf %205 : vector<2x128xf32>
    %207 = math.exp %206 : vector<2x128xf32>
    %cst_47 = arith.constant 1.000000e+00 : f32
    %208 = vector.broadcast %cst_47 : f32 to vector<2x128xf32>
    %209 = arith.addf %208, %207 : vector<2x128xf32>
    %210 = arith.divf %208, %209 : vector<2x128xf32>
    %211 = math.tanh %205 : vector<2x128xf32>
    %212 = vector.extract_strided_slice %210 {offsets = [0, 0], sizes = [2, 32], strides = [1, 1]} : vector<2x128xf32> to vector<2x32xf32>
    %213 = vector.extract_strided_slice %210 {offsets = [0, 32], sizes = [2, 32], strides = [1, 1]} : vector<2x128xf32> to vector<2x32xf32>
    %214 = vector.extract_strided_slice %211 {offsets = [0, 64], sizes = [2, 32], strides = [1, 1]} : vector<2x128xf32> to vector<2x32xf32>
    %215 = vector.extract_strided_slice %210 {offsets = [0, 96], sizes = [2, 32], strides = [1, 1]} : vector<2x128xf32> to vector<2x32xf32>
    %216 = arith.mulf %213, %200 : vector<2x32xf32>
    %217 = arith.mulf %212, %214 : vector<2x32xf32>
    %218 = arith.addf %216, %217 : vector<2x32xf32>
    %219 = math.tanh %218 : vector<2x32xf32>
    %220 = arith.mulf %215, %219 : vector<2x32xf32>
    %221 = vector.extract_strided_slice %166 {offsets = [6, 0], sizes = [2, 128], strides = [1, 1]} : vector<16x128xf32> to vector<2x128xf32>
    %cst_48 = arith.constant dense<0.000000e+00> : vector<2x128xf32>
    %222 = tpu.matmul %220, %1, %cst_48 {dimension_numbers = #tpu.dot_dimension_numbers<[1], [0], [0], [1], [0, 0, 1, 1], [], []>} : vector<2x32xf32>, vector<32x128xf32>, vector<2x128xf32> -> vector<2x128xf32>
    %223 = arith.addf %221, %222 : vector<2x128xf32>
    %224 = arith.negf %223 : vector<2x128xf32>
    %225 = math.exp %224 : vector<2x128xf32>
    %cst_49 = arith.constant 1.000000e+00 : f32
    %226 = vector.broadcast %cst_49 : f32 to vector<2x128xf32>
    %227 = arith.addf %226, %225 : vector<2x128xf32>
    %228 = arith.divf %226, %227 : vector<2x128xf32>
    %229 = math.tanh %223 : vector<2x128xf32>
    %230 = vector.extract_strided_slice %228 {offsets = [0, 0], sizes = [2, 32], strides = [1, 1]} : vector<2x128xf32> to vector<2x32xf32>
    %231 = vector.extract_strided_slice %228 {offsets = [0, 32], sizes = [2, 32], strides = [1, 1]} : vector<2x128xf32> to vector<2x32xf32>
    %232 = vector.extract_strided_slice %229 {offsets = [0, 64], sizes = [2, 32], strides = [1, 1]} : vector<2x128xf32> to vector<2x32xf32>
    %233 = vector.extract_strided_slice %228 {offsets = [0, 96], sizes = [2, 32], strides = [1, 1]} : vector<2x128xf32> to vector<2x32xf32>
    %234 = arith.mulf %231, %218 : vector<2x32xf32>
    %235 = arith.mulf %230, %232 : vector<2x32xf32>
    %236 = arith.addf %234, %235 : vector<2x32xf32>
    %237 = math.tanh %236 : vector<2x32xf32>
    %238 = arith.mulf %233, %237 : vector<2x32xf32>
    %239 = vector.extract_strided_slice %166 {offsets = [8, 0], sizes = [2, 128], strides = [1, 1]} : vector<16x128xf32> to vector<2x128xf32>
    %cst_50 = arith.constant dense<0.000000e+00> : vector<2x128xf32>
    %240 = tpu.matmul %238, %1, %cst_50 {dimension_numbers = #tpu.dot_dimension_numbers<[1], [0], [0], [1], [0, 0, 1, 1], [], []>} : vector<2x32xf32>, vector<32x128xf32>, vector<2x128xf32> -> vector<2x128xf32>
    %241 = arith.addf %239, %240 : vector<2x128xf32>
    %242 = arith.negf %241 : vector<2x128xf32>
    %243 = math.exp %242 : vector<2x128xf32>
    %cst_51 = arith.constant 1.000000e+00 : f32
    %244 = vector.broadcast %cst_51 : f32 to vector<2x128xf32>
    %245 = arith.addf %244, %243 : vector<2x128xf32>
    %246 = arith.divf %244, %245 : vector<2x128xf32>
    %247 = math.tanh %241 : vector<2x128xf32>
    %248 = vector.extract_strided_slice %246 {offsets = [0, 0], sizes = [2, 32], strides = [1, 1]} : vector<2x128xf32> to vector<2x32xf32>
    %249 = vector.extract_strided_slice %246 {offsets = [0, 32], sizes = [2, 32], strides = [1, 1]} : vector<2x128xf32> to vector<2x32xf32>
    %250 = vector.extract_strided_slice %247 {offsets = [0, 64], sizes = [2, 32], strides = [1, 1]} : vector<2x128xf32> to vector<2x32xf32>
    %251 = vector.extract_strided_slice %246 {offsets = [0, 96], sizes = [2, 32], strides = [1, 1]} : vector<2x128xf32> to vector<2x32xf32>
    %252 = arith.mulf %249, %236 : vector<2x32xf32>
    %253 = arith.mulf %248, %250 : vector<2x32xf32>
    %254 = arith.addf %252, %253 : vector<2x32xf32>
    %255 = math.tanh %254 : vector<2x32xf32>
    %256 = arith.mulf %251, %255 : vector<2x32xf32>
    %257 = vector.extract_strided_slice %166 {offsets = [10, 0], sizes = [2, 128], strides = [1, 1]} : vector<16x128xf32> to vector<2x128xf32>
    %cst_52 = arith.constant dense<0.000000e+00> : vector<2x128xf32>
    %258 = tpu.matmul %256, %1, %cst_52 {dimension_numbers = #tpu.dot_dimension_numbers<[1], [0], [0], [1], [0, 0, 1, 1], [], []>} : vector<2x32xf32>, vector<32x128xf32>, vector<2x128xf32> -> vector<2x128xf32>
    %259 = arith.addf %257, %258 : vector<2x128xf32>
    %260 = arith.negf %259 : vector<2x128xf32>
    %261 = math.exp %260 : vector<2x128xf32>
    %cst_53 = arith.constant 1.000000e+00 : f32
    %262 = vector.broadcast %cst_53 : f32 to vector<2x128xf32>
    %263 = arith.addf %262, %261 : vector<2x128xf32>
    %264 = arith.divf %262, %263 : vector<2x128xf32>
    %265 = math.tanh %259 : vector<2x128xf32>
    %266 = vector.extract_strided_slice %264 {offsets = [0, 0], sizes = [2, 32], strides = [1, 1]} : vector<2x128xf32> to vector<2x32xf32>
    %267 = vector.extract_strided_slice %264 {offsets = [0, 32], sizes = [2, 32], strides = [1, 1]} : vector<2x128xf32> to vector<2x32xf32>
    %268 = vector.extract_strided_slice %265 {offsets = [0, 64], sizes = [2, 32], strides = [1, 1]} : vector<2x128xf32> to vector<2x32xf32>
    %269 = vector.extract_strided_slice %264 {offsets = [0, 96], sizes = [2, 32], strides = [1, 1]} : vector<2x128xf32> to vector<2x32xf32>
    %270 = arith.mulf %267, %254 : vector<2x32xf32>
    %271 = arith.mulf %266, %268 : vector<2x32xf32>
    %272 = arith.addf %270, %271 : vector<2x32xf32>
    %273 = math.tanh %272 : vector<2x32xf32>
    %274 = arith.mulf %269, %273 : vector<2x32xf32>
    %275 = vector.extract_strided_slice %166 {offsets = [12, 0], sizes = [2, 128], strides = [1, 1]} : vector<16x128xf32> to vector<2x128xf32>
    %cst_54 = arith.constant dense<0.000000e+00> : vector<2x128xf32>
    %276 = tpu.matmul %274, %1, %cst_54 {dimension_numbers = #tpu.dot_dimension_numbers<[1], [0], [0], [1], [0, 0, 1, 1], [], []>} : vector<2x32xf32>, vector<32x128xf32>, vector<2x128xf32> -> vector<2x128xf32>
    %277 = arith.addf %275, %276 : vector<2x128xf32>
    %278 = arith.negf %277 : vector<2x128xf32>
    %279 = math.exp %278 : vector<2x128xf32>
    %cst_55 = arith.constant 1.000000e+00 : f32
    %280 = vector.broadcast %cst_55 : f32 to vector<2x128xf32>
    %281 = arith.addf %280, %279 : vector<2x128xf32>
    %282 = arith.divf %280, %281 : vector<2x128xf32>
    %283 = math.tanh %277 : vector<2x128xf32>
    %284 = vector.extract_strided_slice %282 {offsets = [0, 0], sizes = [2, 32], strides = [1, 1]} : vector<2x128xf32> to vector<2x32xf32>
    %285 = vector.extract_strided_slice %282 {offsets = [0, 32], sizes = [2, 32], strides = [1, 1]} : vector<2x128xf32> to vector<2x32xf32>
    %286 = vector.extract_strided_slice %283 {offsets = [0, 64], sizes = [2, 32], strides = [1, 1]} : vector<2x128xf32> to vector<2x32xf32>
    %287 = vector.extract_strided_slice %282 {offsets = [0, 96], sizes = [2, 32], strides = [1, 1]} : vector<2x128xf32> to vector<2x32xf32>
    %288 = arith.mulf %285, %272 : vector<2x32xf32>
    %289 = arith.mulf %284, %286 : vector<2x32xf32>
    %290 = arith.addf %288, %289 : vector<2x32xf32>
    %291 = math.tanh %290 : vector<2x32xf32>
    %292 = arith.mulf %287, %291 : vector<2x32xf32>
    %293 = vector.extract_strided_slice %166 {offsets = [14, 0], sizes = [2, 128], strides = [1, 1]} : vector<16x128xf32> to vector<2x128xf32>
    %cst_56 = arith.constant dense<0.000000e+00> : vector<2x128xf32>
    %294 = tpu.matmul %292, %1, %cst_56 {dimension_numbers = #tpu.dot_dimension_numbers<[1], [0], [0], [1], [0, 0, 1, 1], [], []>} : vector<2x32xf32>, vector<32x128xf32>, vector<2x128xf32> -> vector<2x128xf32>
    %295 = arith.addf %293, %294 : vector<2x128xf32>
    %296 = arith.negf %295 : vector<2x128xf32>
    %297 = math.exp %296 : vector<2x128xf32>
    %cst_57 = arith.constant 1.000000e+00 : f32
    %298 = vector.broadcast %cst_57 : f32 to vector<2x128xf32>
    %299 = arith.addf %298, %297 : vector<2x128xf32>
    %300 = arith.divf %298, %299 : vector<2x128xf32>
    %301 = math.tanh %295 : vector<2x128xf32>
    %302 = vector.extract_strided_slice %300 {offsets = [0, 0], sizes = [2, 32], strides = [1, 1]} : vector<2x128xf32> to vector<2x32xf32>
    %303 = vector.extract_strided_slice %300 {offsets = [0, 32], sizes = [2, 32], strides = [1, 1]} : vector<2x128xf32> to vector<2x32xf32>
    %304 = vector.extract_strided_slice %301 {offsets = [0, 64], sizes = [2, 32], strides = [1, 1]} : vector<2x128xf32> to vector<2x32xf32>
    %305 = vector.extract_strided_slice %300 {offsets = [0, 96], sizes = [2, 32], strides = [1, 1]} : vector<2x128xf32> to vector<2x32xf32>
    %306 = arith.mulf %303, %290 : vector<2x32xf32>
    %307 = arith.mulf %302, %304 : vector<2x32xf32>
    %308 = arith.addf %306, %307 : vector<2x32xf32>
    %309 = math.tanh %308 : vector<2x32xf32>
    %310 = arith.mulf %305, %309 : vector<2x32xf32>
    %cst_58 = arith.constant dense<0.000000e+00> : vector<2xf32>
    %311 = vector.multi_reduction <add>, %310, %cst_58 [1] : vector<2x32xf32> to vector<2xf32>
    %312 = vector.shape_cast %311 : vector<2xf32> to vector<2x1xf32>
    %cst_59 = arith.constant 3.200000e+01 : f32
    %313 = vector.broadcast %cst_59 : f32 to vector<2x1xf32>
    %314 = arith.divf %312, %313 : vector<2x1xf32>
    %315 = vector.broadcast %314 : vector<2x1xf32> to vector<2x32xf32>
    %316 = arith.subf %310, %315 : vector<2x32xf32>
    %317 = arith.mulf %316, %316 : vector<2x32xf32>
    %cst_60 = arith.constant dense<0.000000e+00> : vector<2xf32>
    %318 = vector.multi_reduction <add>, %317, %cst_60 [1] : vector<2x32xf32> to vector<2xf32>
    %319 = vector.shape_cast %318 : vector<2xf32> to vector<2x1xf32>
    %cst_61 = arith.constant 3.200000e+01 : f32
    %320 = vector.broadcast %cst_61 : f32 to vector<2x1xf32>
    %321 = arith.divf %319, %320 : vector<2x1xf32>
    %322 = vector.broadcast %314 : vector<2x1xf32> to vector<2x32xf32>
    %323 = arith.subf %310, %322 : vector<2x32xf32>
    %cst_62 = arith.constant 9.99999974E-6 : f32
    %324 = vector.broadcast %cst_62 : f32 to vector<2x1xf32>
    %325 = arith.addf %321, %324 : vector<2x1xf32>
    %326 = math.rsqrt %325 : vector<2x1xf32>
    %327 = vector.broadcast %326 : vector<2x1xf32> to vector<2x32xf32>
    %328 = arith.mulf %323, %327 : vector<2x32xf32>
    %c0_63 = arith.constant 0 : index
    %c0_64 = arith.constant 0 : index
    %329 = vector.load %arg7[%c0_63, %c0_64] : memref<1x32xf32, #tpu.memory_space<vmem>>, vector<1x32xf32>
    %330 = vector.broadcast %329 : vector<1x32xf32> to vector<2x32xf32>
    %331 = arith.mulf %328, %330 : vector<2x32xf32>
    %c0_65 = arith.constant 0 : index
    %c0_66 = arith.constant 0 : index
    %332 = vector.load %arg8[%c0_65, %c0_66] : memref<1x32xf32, #tpu.memory_space<vmem>>, vector<1x32xf32>
    %333 = vector.broadcast %332 : vector<1x32xf32> to vector<2x32xf32>
    %334 = arith.addf %331, %333 : vector<2x32xf32>
    %cst_67 = arith.constant 0.000000e+00 : f32
    %335 = vector.broadcast %cst_67 : f32 to vector<2x32xf32>
    %336 = arith.maximumf %334, %335 : vector<2x32xf32>
    %c0_68 = arith.constant 0 : index
    %c0_69 = arith.constant 0 : index
    %337 = vector.load %arg9[%c0_68, %c0_69] : memref<32x8xf32, #tpu.memory_space<vmem>>, vector<32x8xf32>
    %cst_70 = arith.constant dense<0.000000e+00> : vector<2x8xf32>
    %338 = tpu.matmul %336, %337, %cst_70 {dimension_numbers = #tpu.dot_dimension_numbers<[1], [0], [0], [1], [0, 0, 1, 1], [], []>} : vector<2x32xf32>, vector<32x8xf32>, vector<2x8xf32> -> vector<2x8xf32>
    %c0_71 = arith.constant 0 : index
    %c0_72 = arith.constant 0 : index
    %339 = vector.load %arg10[%c0_71, %c0_72] : memref<1x8xf32, #tpu.memory_space<vmem>>, vector<1x8xf32>
    %340 = vector.broadcast %339 : vector<1x8xf32> to vector<2x8xf32>
    %341 = arith.addf %338, %340 : vector<2x8xf32>
    %c0_73 = arith.constant 0 : index
    %c0_74 = arith.constant 0 : index
    %342 = vector.load %arg11[%c0_73, %c0_74] : memref<2x8xf32, #tpu.memory_space<vmem>>, vector<2x8xf32>
    tpu.vector_store %arg11[%c0_73, %c0_74], %341 {strides = array<i32>} : memref<2x8xf32, #tpu.memory_space<vmem>>, vector<2x8xf32>,
    return
  }
}

</mosaic_0001>

<llo_original>
// kernel: tpu_custom_call.1
$region0: #{tpu_custom_call.1}
  #allocation0 [shape = 'u32[]', space=smem, size = 0x4, offset = 0x4, fixed_abs, tag = 'smem constant byte address 0x4 - core index']
  #allocation1 [shape = 'u32[144,128]{1,0:T(1,128)}', space=vmem, size = 0x12000, scoped, tag = 'internal scratch']
  #allocation2 [shape = 'f32[16,32]{1,0:T(8,128)}', space=vmem, size = 0x2000, scoped, tag = 'scratch operand']
  %s0 = inlined_call_operand.vmem [shape: f32[16,4], index: 0, kind: input, shape index: {}]
  %s1 = inlined_call_operand.hbm [shape: f32[4,128], index: 1, kind: input, shape index: {}]
  %s2 = inlined_call_operand.vmem [shape: f32[32,128], index: 2, kind: input, shape index: {}]
  %s3 = inlined_call_operand.vmem [shape: f32[1,128], index: 3, kind: input, shape index: {}]
  %s4 = inlined_call_operand.vmem [shape: f32[32,128], index: 4, kind: input, shape index: {}]
  %s5 = inlined_call_operand.hbm [shape: f32[32,128], index: 5, kind: input, shape index: {}]
  %s6 = inlined_call_operand.vmem [shape: f32[1,128], index: 6, kind: input, shape index: {}]
  %s7 = inlined_call_operand.vmem [shape: f32[1,32], index: 7, kind: input, shape index: {}]
  %s8 = inlined_call_operand.vmem [shape: f32[1,32], index: 8, kind: input, shape index: {}]
  %s9 = inlined_call_operand.vmem [shape: f32[32,8], index: 9, kind: input, shape index: {}]
  %s10 = inlined_call_operand.vmem [shape: f32[1,8], index: 10, kind: input, shape index: {}]
  %s11 = inlined_call_operand.hbm [shape: f32[2,8], index: 11, kind: output, shape index: {}]
  %s12 = sld [smem:[#allocation0]]
  $region62: #{tpu_custom_call.1} parent=0
    _
  %s14 = ssub.s32 1, %s12
  %s15 = scalar_select 0, %s14, %s12
  $region1: #{tpu_custom_call.1} parent=0
    #allocation3 [shape = 'u8[2048]{0}', space=vmem, size = 0x800, scoped, tag = 'input window, operand 1, single buffered']
    #allocation4 [shape = 's32[1]{0}', space=sflag, size = 0x4, scoped, tag = 'scoped memory for tpu_custom_call.1']
    #allocation5 [shape = 's32[1]{0}', space=sflag, size = 0x4, scoped, tag = 'scoped memory for tpu_custom_call.1']
    #allocation6 [shape = 'u8[16384]{0}', space=vmem, size = 0x4000, scoped, tag = 'input window, operand 5, single buffered']
    #allocation7 [shape = 's32[1]{0}', space=sflag, size = 0x4, scoped, tag = 'scoped memory for tpu_custom_call.1']
    #allocation8 [shape = 'u8[1024]{0}', space=vmem, size = 0x400, scoped, tag = 'output window, operand 0, single buffered']
    %16 = vsyncpa [#allocation4], 0
    %17 = vsyncpa [#allocation7], 0
    %18 = vsyncpa [#allocation5], 0
    // Predicated region
    $region2: #{tpu_custom_call.1} parent=1 // pred_check
      _
    $region3: #{tpu_custom_call.1} parent=1 // pred_check_branch
      %20 = sbr.rel (0) target = $region5
    $region4: #{tpu_custom_call.1} parent=1 // pred_region
      _
    $region5: #{tpu_custom_call.1} parent=1 // pred_fallthru
      _
    // Predicated region
    $region6: #{tpu_custom_call.1} parent=1 // pred_check
      _
    $region7: #{tpu_custom_call.1} parent=1 // pred_check_branch
      %22 = sbr.rel (0) target = $region9
    $region8: #{tpu_custom_call.1} parent=1 // pred_region
      %s24 = ssub.s32 64, 64
      %25 = vsyncadd [#allocation4], %s24
      %s27 = sshll.u32 [#allocation3], 4
      %s28 = int_to_ptr.vmem [resolvable:$true] %s27
      %30 = dma.hbm_to_vmem [thread:$0]  %s1, 64, %s28, [#allocation4]
    $region9: #{tpu_custom_call.1} parent=1 // pred_fallthru
      _
    // Predicated region
    $region10: #{tpu_custom_call.1} parent=1 // pred_check
      _
    $region11: #{tpu_custom_call.1} parent=1 // pred_check_branch
      %32 = sbr.rel (0) target = $region13
    $region12: #{tpu_custom_call.1} parent=1 // pred_region
      _
    $region13: #{tpu_custom_call.1} parent=1 // pred_fallthru
      _
    // Predicated region
    $region14: #{tpu_custom_call.1} parent=1 // pred_check
      _
    $region15: #{tpu_custom_call.1} parent=1 // pred_check_branch
      %34 = sbr.rel (0) target = $region17
    $region16: #{tpu_custom_call.1} parent=1 // pred_region
      _
    $region17: #{tpu_custom_call.1} parent=1 // pred_fallthru
      _
    // Predicated region
    $region18: #{tpu_custom_call.1} parent=1 // pred_check
      _
    $region19: #{tpu_custom_call.1} parent=1 // pred_check_branch
      %36 = sbr.rel (0) target = $region21
    $region20: #{tpu_custom_call.1} parent=1 // pred_region
      _
    $region21: #{tpu_custom_call.1} parent=1 // pred_fallthru
      _
    // Predicated region
    $region22: #{tpu_custom_call.1} parent=1 // pred_check
      _
    $region23: #{tpu_custom_call.1} parent=1 // pred_check_branch
      %38 = sbr.rel (0) target = $region25
    $region24: #{tpu_custom_call.1} parent=1 // pred_region
      %s40 = ssub.s32 512, 512
      %41 = vsyncadd [#allocation7], %s40
      %s42 = sshll.u32 [#allocation6], 4
      %s43 = int_to_ptr.vmem [resolvable:$true] %s42
      %48 = dma.hbm_to_vmem [thread:$0]  %s5, 512, %s43, [#allocation7], 128, 128, 8
    $region25: #{tpu_custom_call.1} parent=1 // pred_fallthru
      _
    // Predicated region
    $region26: #{tpu_custom_call.1} parent=1 // pred_check
      _
    $region27: #{tpu_custom_call.1} parent=1 // pred_check_branch
      %50 = sbr.rel (0) target = $region29
    $region28: #{tpu_custom_call.1} parent=1 // pred_region
      _
    $region29: #{tpu_custom_call.1} parent=1 // pred_fallthru
      _
    // Predicated region
    $region30: #{tpu_custom_call.1} parent=1 // pred_check
      _
    $region31: #{tpu_custom_call.1} parent=1 // pred_check_branch
      %52 = sbr.rel (0) target = $region33
    $region32: #{tpu_custom_call.1} parent=1 // pred_region
      _
    $region33: #{tpu_custom_call.1} parent=1 // pred_fallthru
      _
    // Predicated region
    $region34: #{tpu_custom_call.1} parent=1 // pred_check
      _
    $region35: #{tpu_custom_call.1} parent=1 // pred_check_branch
      %54 = sbr.rel (0) target = $region37
    $region36: #{tpu_custom_call.1} parent=1 // pred_region
      _
    $region37: #{tpu_custom_call.1} parent=1 // pred_fallthru
      _
    // Predicated region
    $region38: #{tpu_custom_call.1} parent=1 // pred_check
      _
    $region39: #{tpu_custom_call.1} parent=1 // pred_check_branch
      %56 = sbr.rel (0) target = $region41
    $region40: #{tpu_custom_call.1} parent=1 // pred_region
      _
    $region41: #{tpu_custom_call.1} parent=1 // pred_fallthru
      _
    // Predicated region
    $region42: #{tpu_custom_call.1} parent=1 // pred_check
      _
    $region43: #{tpu_custom_call.1} parent=1 // pred_check_branch
      %58 = sbr.rel (0) target = $region45
    $region44: #{tpu_custom_call.1} parent=1 // pred_region
      _
    $region45: #{tpu_custom_call.1} parent=1 // pred_fallthru
      _
    // Predicated region
    $region46: #{tpu_custom_call.1} parent=1 // pred_check
      _
    $region47: #{tpu_custom_call.1} parent=1 // pred_check_branch
      %60 = sbr.rel (0) target = $region49
    $region48: #{tpu_custom_call.1} parent=1 // pred_region
      %61 = dma.done [#allocation4], 64
    $region49: #{tpu_custom_call.1} parent=1 // pred_fallthru
      _
    // Predicated region
    $region50: #{tpu_custom_call.1} parent=1 // pred_check
      _
    $region51: #{tpu_custom_call.1} parent=1 // pred_check_branch
      %63 = sbr.rel (0) target = $region53
    $region52: #{tpu_custom_call.1} parent=1 // pred_region
      %64 = dma.done [#allocation7], 512
    $region53: #{tpu_custom_call.1} parent=1 // pred_fallthru
      _
    %v65 = vld [vmem:[%s2] sm:$0xff]
    %v66 = vld [vmem:[%s2 + $0x8] sm:$0xff]
    %v67 = vld [vmem:[%s2 + $0x10] sm:$0xff]
    %v68 = vld [vmem:[%s2 + $0x18] sm:$0xff]
    %v69 = vld [vmem:[#allocation6] sm:$0xff]
    %v70 = vld [vmem:[#allocation6 + $0x8] sm:$0xff]
    %v71 = vld [vmem:[#allocation6 + $0x10] sm:$0xff]
    %v72 = vld [vmem:[#allocation6 + $0x18] sm:$0xff]
    %v73 = vld [vmem:[%s0] sm:$0xff]
    %v74 = vld [vmem:[%s0 + $0x8] sm:$0xff]
    %v75 = vld [vmem:[#allocation3] sm:$0xf]
    %v76 = vld [vmem:[%s3] sm:$0x1]
    %v78 = vlaneseq
    %v79 = vshrl.u32 %v78, 7
    %v80 = vsub.s32 0, %v79
    %v81 = vrot.slane %v76, %v80
    %vm83 = vcmask 31744
    %v85 = vsel %vm83, %v73, 0
    %v88 = vsel %vm83, %v74, 0
    %vm90 = vcmask 1043456
    %v92 = vsel %vm90, %v75, 0
    %94 = vmatprep.subr.mxu0 0.0
    %95 = vmatpush1.msra.mxu0 %v92
    %96 = vmatprep.subr.mxu0 0.0
    %97 = vmatpush1.msra.mxu0 0.0
    %98 = vmatprep.subr.mxu0 0.0
    %99 = vmatpush1.msra.mxu0 0.0
    %100 = vmatprep.subr.mxu0 0.0
    %101 = vmatpush1.msra.mxu0 0.0
    %102 = vmatprep.subr.mxu0 0.0
    %103 = vmatpush1.msra.mxu0 0.0
    %104 = vmatprep.subr.mxu0 0.0
    %105 = vmatpush1.msra.mxu0 0.0
    %106 = vmatprep.subr.mxu0 0.0
    %107 = vmatpush1.msra.mxu0 0.0
    %108 = vmatprep.subr.mxu0 0.0
    %109 = vmatpush1.msra.mxu0 0.0
    %110 = vmatprep.subr.mxu0 0.0
    %111 = vmatpush1.msra.mxu0 0.0
    %112 = vmatprep.subr.mxu0 0.0
    %113 = vmatpush1.msra.mxu0 0.0
    %114 = vmatprep.subr.mxu0 0.0
    %115 = vmatpush1.msra.mxu0 0.0
    %116 = vmatprep.subr.mxu0 0.0
    %117 = vmatpush1.msra.mxu0 0.0
    %118 = vmatprep.subr.mxu0 0.0
    %119 = vmatpush1.msra.mxu0 0.0
    %120 = vmatprep.subr.mxu0 0.0
    %121 = vmatpush1.msra.mxu0 0.0
    %122 = vmatprep.subr.mxu0 0.0
    %123 = vmatpush1.msra.mxu0 0.0
    %124 = vmatprep.subr.mxu0 0.0
    %125 = vmatpush1.msra.mxu0 0.0
    %126 = vmatprep.subr.mxu0 0.0
    %127 = vmatpush1.msra.mxu0 0.0
    %128 = vmatprep.subr.mxu0 0.0
    %129 = vmatpush1.msra.mxu0 0.0
    %130 = vmatprep.subr.mxu0 0.0
    %131 = vmatpush1.msra.mxu0 0.0
    %132 = vmatprep.subr.mxu0 0.0
    %133 = vmatpush1.msra.mxu0 0.0
    %134 = vmatprep.subr.mxu0 0.0
    %135 = vmatpush1.msra.mxu0 0.0
    %136 = vmatprep.subr.mxu0 0.0
    %137 = vmatpush1.msra.mxu0 0.0
    %138 = vmatprep.subr.mxu0 0.0
    %139 = vmatpush1.msra.mxu0 0.0
    %140 = vmatprep.subr.mxu0 0.0
    %141 = vmatpush1.msra.mxu0 0.0
    %142 = vmatprep.subr.mxu0 0.0
    %143 = vmatpush1.msra.mxu0 0.0
    %144 = vmatprep.subr.mxu0 0.0
    %145 = vmatpush1.msra.mxu0 0.0
    %146 = vmatprep.subr.mxu0 0.0
    %147 = vmatpush1.msra.mxu0 0.0
    %148 = vmatprep.subr.mxu0 0.0
    %149 = vmatpush1.msra.mxu0 0.0
    %150 = vmatprep.subr.mxu0 0.0
    %151 = vmatpush1.msra.mxu0 0.0
    %152 = vmatprep.subr.mxu0 0.0
    %153 = vmatpush1.msra.mxu0 0.0
    %154 = vmatprep.subr.mxu0 0.0
    %155 = vmatpush1.msra.mxu0 0.0
    %156 = vmatprep.subr.mxu0 0.0
    %157 = vmatpush1.msra.mxu0 0.0
    %158 = vmatprep.mubr.f32.mxu0 0.0
    %159 = vmatmul.mubr.f32.gmra.mrb[0].mxu0 %v85
    %v160 = vpop.f32.mrb[0].mxu0
    %v161 = vadd.f32 %v81, %v160
    %v162 = vpop.f32.mrb[0].mxu0
    %163 = vmatprep.mubr.f32.mxu0 0.0
    %164 = vmatmul.mubr.f32.gmra.mrb[0].mxu0 %v88
    %v165 = vpop.f32.mrb[0].mxu0
    %v166 = vadd.f32 %v81, %v165
    %v167 = vpop.f32.mrb[0].mxu0
    %168 = vdwg.mxu0
    %vm169 = vcmask 261120
    %v171 = vsel %vm169, 0.0, 0
    %173 = vmatprep.subr.mxu0 0.0
    %174 = vmatpush1.msra.mxu0 %v65
    %175 = vmatprep.subr.mxu0 0.0
    %176 = vmatpush1.msra.mxu0 %v66
    %177 = vmatprep.subr.mxu0 0.0
    %178 = vmatpush1.msra.mxu0 %v67
    %179 = vmatprep.subr.mxu0 0.0
    %180 = vmatpush1.msra.mxu0 %v68
    %181 = vmatprep.subr.mxu0 0.0
    %182 = vmatpush1.msra.mxu0 0.0
    %183 = vmatprep.subr.mxu0 0.0
    %184 = vmatpush1.msra.mxu0 0.0
    %185 = vmatprep.subr.mxu0 0.0
    %186 = vmatpush1.msra.mxu0 0.0
    %187 = vmatprep.subr.mxu0 0.0
    %188 = vmatpush1.msra.mxu0 0.0
    %189 = vmatprep.subr.mxu0 0.0
    %190 = vmatpush1.msra.mxu0 0.0
    %191 = vmatprep.subr.mxu0 0.0
    %192 = vmatpush1.msra.mxu0 0.0
    %193 = vmatprep.subr.mxu0 0.0
    %194 = vmatpush1.msra.mxu0 0.0
    %195 = vmatprep.subr.mxu0 0.0
    %196 = vmatpush1.msra.mxu0 0.0
    %197 = vmatprep.subr.mxu0 0.0
    %198 = vmatpush1.msra.mxu0 0.0
    %199 = vmatprep.subr.mxu0 0.0
    %200 = vmatpush1.msra.mxu0 0.0
    %201 = vmatprep.subr.mxu0 0.0
    %202 = vmatpush1.msra.mxu0 0.0
    %203 = vmatprep.subr.mxu0 0.0
    %204 = vmatpush1.msra.mxu0 0.0
    %205 = vmatprep.subr.mxu0 0.0
    %206 = vmatpush1.msra.mxu0 0.0
    %207 = vmatprep.subr.mxu0 0.0
    %208 = vmatpush1.msra.mxu0 0.0
    %209 = vmatprep.subr.mxu0 0.0
    %210 = vmatpush1.msra.mxu0 0.0
    %211 = vmatprep.subr.mxu0 0.0
    %212 = vmatpush1.msra.mxu0 0.0
    %213 = vmatprep.subr.mxu0 0.0
    %214 = vmatpush1.msra.mxu0 0.0
    %215 = vmatprep.subr.mxu0 0.0
    %216 = vmatpush1.msra.mxu0 0.0
    %217 = vmatprep.subr.mxu0 0.0
    %218 = vmatpush1.msra.mxu0 0.0
    %219 = vmatprep.subr.mxu0 0.0
    %220 = vmatpush1.msra.mxu0 0.0
    %221 = vmatprep.subr.mxu0 0.0
    %222 = vmatpush1.msra.mxu0 0.0
    %223 = vmatprep.subr.mxu0 0.0
    %224 = vmatpush1.msra.mxu0 0.0
    %225 = vmatprep.subr.mxu0 0.0
    %226 = vmatpush1.msra.mxu0 0.0
    %227 = vmatprep.subr.mxu0 0.0
    %228 = vmatpush1.msra.mxu0 0.0
    %229 = vmatprep.subr.mxu0 0.0
    %230 = vmatpush1.msra.mxu0 0.0
    %231 = vmatprep.subr.mxu0 0.0
    %232 = vmatpush1.msra.mxu0 0.0
    %233 = vmatprep.subr.mxu0 0.0
    %234 = vmatpush1.msra.mxu0 0.0
    %235 = vmatprep.subr.mxu0 0.0
    %236 = vmatpush1.msra.mxu0 0.0
    %237 = vmatprep.mubr.f32.mxu0 0.0
    %238 = vmatmul.mubr.f32.gmra.mrb[0].mxu0 %v171
    %v239 = vpop.f32.mrb[0].mxu0
    %v240 = vadd.f32 0.0, %v239
    %v241 = vpop.f32.mrb[0].mxu0
    %242 = vdwg.mxu0
    %v243 = vadd.f32 %v161, %v240
    %v244 = vxor.u32 %v243, 2147483648
    %v245 = vmul.f32 %v244, 1.442695
    %v246 = vpow.pop %v245
    %v247 = vadd.f32 %v246, 1.0
    %v248 = vrcp.pop %v247
    %v249 = vmul.f32 1.0, %v248
    %v250 = vtanh.pop %v243
    %v251 = vmul.f32 %v249, 0.0
    %253 = vrot.lane.b32.xlu0 %v250, 64
    %v254 = vpop.permute.xlu0 %253
    %v256 = vmul.f32 %v249, %v254
    %258 = vrot.lane.b32.xlu0 %v256, 32
    %v259 = vpop.permute.xlu0 %258
    %v261 = vadd.f32 %v251, %v259
    %v262 = vtanh.pop %v261
    %264 = vrot.lane.b32.xlu0 %v262, 64
    %v265 = vpop.permute.xlu0 %264
    %v267 = vmul.f32 %v249, %v265
    %269 = vrot.lane.b32.xlu0 %v267, 32
    %v270 = vpop.permute.xlu0 %269
    %vm272 = vcmask 254976
    %273 = vst.msk [vmem:[#allocation2] sm:$0x3] %vm272, %v270
    %v274 = vsel %vm169, %v270, 0
    %276 = vmatprep.subr.mxu0 0.0
    %277 = vmatpush1.msra.mxu0 %v65
    %278 = vmatprep.subr.mxu0 0.0
    %279 = vmatpush1.msra.mxu0 %v66
    %280 = vmatprep.subr.mxu0 0.0
    %281 = vmatpush1.msra.mxu0 %v67
    %282 = vmatprep.subr.mxu0 0.0
    %283 = vmatpush1.msra.mxu0 %v68
    %284 = vmatprep.subr.mxu0 0.0
    %285 = vmatpush1.msra.mxu0 0.0
    %286 = vmatprep.subr.mxu0 0.0
    %287 = vmatpush1.msra.mxu0 0.0
    %288 = vmatprep.subr.mxu0 0.0
    %289 = vmatpush1.msra.mxu0 0.0
    %290 = vmatprep.subr.mxu0 0.0
    %291 = vmatpush1.msra.mxu0 0.0
    %292 = vmatprep.subr.mxu0 0.0
    %293 = vmatpush1.msra.mxu0 0.0
    %294 = vmatprep.subr.mxu0 0.0
    %295 = vmatpush1.msra.mxu0 0.0
    %296 = vmatprep.subr.mxu0 0.0
    %297 = vmatpush1.msra.mxu0 0.0
    %298 = vmatprep.subr.mxu0 0.0
    %299 = vmatpush1.msra.mxu0 0.0
    %300 = vmatprep.subr.mxu0 0.0
    %301 = vmatpush1.msra.mxu0 0.0
    %302 = vmatprep.subr.mxu0 0.0
    %303 = vmatpush1.msra.mxu0 0.0
    %304 = vmatprep.subr.mxu0 0.0
    %305 = vmatpush1.msra.mxu0 0.0
    %306 = vmatprep.subr.mxu0 0.0
    %307 = vmatpush1.msra.mxu0 0.0
    %308 = vmatprep.subr.mxu0 0.0
    %309 = vmatpush1.msra.mxu0 0.0
    %310 = vmatprep.subr.mxu0 0.0
    %311 = vmatpush1.msra.mxu0 0.0
    %312 = vmatprep.subr.mxu0 0.0
    %313 = vmatpush1.msra.mxu0 0.0
    %314 = vmatprep.subr.mxu0 0.0
    %315 = vmatpush1.msra.mxu0 0.0
    %316 = vmatprep.subr.mxu0 0.0
    %317 = vmatpush1.msra.mxu0 0.0
    %318 = vmatprep.subr.mxu0 0.0
    %319 = vmatpush1.msra.mxu0 0.0
    %320 = vmatprep.subr.mxu0 0.0
    %321 = vmatpush1.msra.mxu0 0.0
    %322 = vmatprep.subr.mxu0 0.0
    %323 = vmatpush1.msra.mxu0 0.0
    %324 = vmatprep.subr.mxu0 0.0
    %325 = vmatpush1.msra.mxu0 0.0
    %326 = vmatprep.subr.mxu0 0.0
    %327 = vmatpush1.msra.mxu0 0.0
    %328 = vmatprep.subr.mxu0 0.0
    %329 = vmatpush1.msra.mxu0 0.0
    %330 = vmatprep.subr.mxu0 0.0
    %331 = vmatpush1.msra.mxu0 0.0
    %332 = vmatprep.subr.mxu0 0.0
    %333 = vmatpush1.msra.mxu0 0.0
    %334 = vmatprep.subr.mxu0 0.0
    %335 = vmatpush1.msra.mxu0 0.0
    %336 = vmatprep.subr.mxu0 0.0
    %337 = vmatpush1.msra.mxu0 0.0
    %338 = vmatprep.subr.mxu0 0.0
    %339 = vmatpush1.msra.mxu0 0.0
    %340 = vmatprep.mubr.f32.mxu0 0.0
    %341 = vmatmul.mubr.f32.gmra.mrb[0].mxu0 %v274
    %v342 = vpop.f32.mrb[0].mxu0
    %v343 = vadd.f32 0.0, %v342
    %v344 = vpop.f32.mrb[0].mxu0
    %345 = vdwg.mxu0
    %v347 = vrot.slane %v343, 6
    %v349 = vadd.f32 %v161, %v347
    %v350 = vxor.u32 %v349, 2147483648
    %v351 = vmul.f32 %v350, 1.442695
    %v352 = vpow.pop %v351
    %v353 = vadd.f32 %v352, 1.0
    %v354 = vrcp.pop %v353
    %v355 = vmul.f32 1.0, %v354
    %v356 = vtanh.pop %v349
    %v358 = vrot.slane %v261, 6
    %v360 = vmul.f32 %v355, %v358
    %362 = vrot.lane.b32.xlu0 %v356, 64
    %v363 = vpop.permute.xlu0 %362
    %v365 = vmul.f32 %v355, %v363
    %367 = vrot.lane.b32.xlu0 %v365, 32
    %v368 = vpop.permute.xlu0 %367
    %v370 = vadd.f32 %v360, %v368
    %v371 = vtanh.pop %v370
    %373 = vrot.lane.b32.xlu0 %v371, 64
    %v374 = vpop.permute.xlu0 %373
    %v376 = vmul.f32 %v355, %v374
    %378 = vrot.lane.b32.xlu0 %v376, 32
    %v379 = vpop.permute.xlu0 %378
    %vm381 = vcmask 257026
    %382 = vst.msk [vmem:[#allocation2] sm:$0xc] %vm381, %v379
    %v383 = vrot.slane %v376, 2
    %384 = vrot.lane.b32.xlu0 %v383, 32
    %v385 = vpop.permute.xlu0 %384
    %v386 = vsel %vm169, %v385, 0
    %388 = vmatprep.subr.mxu0 0.0
    %389 = vmatpush1.msra.mxu0 %v65
    %390 = vmatprep.subr.mxu0 0.0
    %391 = vmatpush1.msra.mxu0 %v66
    %392 = vmatprep.subr.mxu0 0.0
    %393 = vmatpush1.msra.mxu0 %v67
    %394 = vmatprep.subr.mxu0 0.0
    %395 = vmatpush1.msra.mxu0 %v68
    %396 = vmatprep.subr.mxu0 0.0
    %397 = vmatpush1.msra.mxu0 0.0
    %398 = vmatprep.subr.mxu0 0.0
    %399 = vmatpush1.msra.mxu0 0.0
    %400 = vmatprep.subr.mxu0 0.0
    %401 = vmatpush1.msra.mxu0 0.0
    %402 = vmatprep.subr.mxu0 0.0
    %403 = vmatpush1.msra.mxu0 0.0
    %404 = vmatprep.subr.mxu0 0.0
    %405 = vmatpush1.msra.mxu0 0.0
    %406 = vmatprep.subr.mxu0 0.0
    %407 = vmatpush1.msra.mxu0 0.0
    %408 = vmatprep.subr.mxu0 0.0
    %409 = vmatpush1.msra.mxu0 0.0
    %410 = vmatprep.subr.mxu0 0.0
    %411 = vmatpush1.msra.mxu0 0.0
    %412 = vmatprep.subr.mxu0 0.0
    %413 = vmatpush1.msra.mxu0 0.0
    %414 = vmatprep.subr.mxu0 0.0
    %415 = vmatpush1.msra.mxu0 0.0
    %416 = vmatprep.subr.mxu0 0.0
    %417 = vmatpush1.msra.mxu0 0.0
    %418 = vmatprep.subr.mxu0 0.0
    %419 = vmatpush1.msra.mxu0 0.0
    %420 = vmatprep.subr.mxu0 0.0
    %421 = vmatpush1.msra.mxu0 0.0
    %422 = vmatprep.subr.mxu0 0.0
    %423 = vmatpush1.msra.mxu0 0.0
    %424 = vmatprep.subr.mxu0 0.0
    %425 = vmatpush1.msra.mxu0 0.0
    %426 = vmatprep.subr.mxu0 0.0
    %427 = vmatpush1.msra.mxu0 0.0
    %428 = vmatprep.subr.mxu0 0.0
    %429 = vmatpush1.msra.mxu0 0.0
    %430 = vmatprep.subr.mxu0 0.0
    %431 = vmatpush1.msra.mxu0 0.0
    %432 = vmatprep.subr.mxu0 0.0
    %433 = vmatpush1.msra.mxu0 0.0
    %434 = vmatprep.subr.mxu0 0.0
    %435 = vmatpush1.msra.mxu0 0.0
    %436 = vmatprep.subr.mxu0 0.0
    %437 = vmatpush1.msra.mxu0 0.0
    %438 = vmatprep.subr.mxu0 0.0
    %439 = vmatpush1.msra.mxu0 0.0
    %440 = vmatprep.subr.mxu0 0.0
    %441 = vmatpush1.msra.mxu0 0.0
    %442 = vmatprep.subr.mxu0 0.0
    %443 = vmatpush1.msra.mxu0 0.0
    %444 = vmatprep.subr.mxu0 0.0
    %445 = vmatpush1.msra.mxu0 0.0
    %446 = vmatprep.subr.mxu0 0.0
    %447 = vmatpush1.msra.mxu0 0.0
    %448 = vmatprep.subr.mxu0 0.0
    %449 = vmatpush1.msra.mxu0 0.0
    %450 = vmatprep.subr.mxu0 0.0
    %451 = vmatpush1.msra.mxu0 0.0
    %452 = vmatprep.mubr.f32.mxu0 0.0
    %453 = vmatmul.mubr.f32.gmra.mrb[0].mxu0 %v386
    %v454 = vpop.f32.mrb[0].mxu0
    %v455 = vadd.f32 0.0, %v454
    %v456 = vpop.f32.mrb[0].mxu0
    %457 = vdwg.mxu0
    %v459 = vrot.slane %v455, 4
    %v461 = vadd.f32 %v161, %v459
    %v462 = vxor.u32 %v461, 2147483648
    %v463 = vmul.f32 %v462, 1.442695
    %v464 = vpow.pop %v463
    %v465 = vadd.f32 %v464, 1.0
    %v466 = vrcp.pop %v465
    %v467 = vmul.f32 1.0, %v466
    %v468 = vtanh.pop %v461
    %v470 = vrot.slane %v370, 6
    %v472 = vmul.f32 %v467, %v470
    %474 = vrot.lane.b32.xlu0 %v468, 64
    %v475 = vpop.permute.xlu0 %474
    %v477 = vmul.f32 %v467, %v475
    %479 = vrot.lane.b32.xlu0 %v477, 32
    %v480 = vpop.permute.xlu0 %479
    %v482 = vadd.f32 %v472, %v480
    %v483 = vtanh.pop %v482
    %485 = vrot.lane.b32.xlu0 %v483, 64
    %v486 = vpop.permute.xlu0 %485
    %v488 = vmul.f32 %v467, %v486
    %490 = vrot.lane.b32.xlu0 %v488, 32
    %v491 = vpop.permute.xlu0 %490
    %vm493 = vcmask 259076
    %494 = vst.msk [vmem:[#allocation2] sm:$0x30] %vm493, %v491
    %v495 = vrot.slane %v488, 4
    %496 = vrot.lane.b32.xlu0 %v495, 32
    %v497 = vpop.permute.xlu0 %496
    %v498 = vsel %vm169, %v497, 0
    %500 = vmatprep.subr.mxu0 0.0
    %501 = vmatpush1.msra.mxu0 %v65
    %502 = vmatprep.subr.mxu0 0.0
    %503 = vmatpush1.msra.mxu0 %v66
    %504 = vmatprep.subr.mxu0 0.0
    %505 = vmatpush1.msra.mxu0 %v67
    %506 = vmatprep.subr.mxu0 0.0
    %507 = vmatpush1.msra.mxu0 %v68
    %508 = vmatprep.subr.mxu0 0.0
    %509 = vmatpush1.msra.mxu0 0.0
    %510 = vmatprep.subr.mxu0 0.0
    %511 = vmatpush1.msra.mxu0 0.0
    %512 = vmatprep.subr.mxu0 0.0
    %513 = vmatpush1.msra.mxu0 0.0
    %514 = vmatprep.subr.mxu0 0.0
    %515 = vmatpush1.msra.mxu0 0.0
    %516 = vmatprep.subr.mxu0 0.0
    %517 = vmatpush1.msra.mxu0 0.0
    %518 = vmatprep.subr.mxu0 0.0
    %519 = vmatpush1.msra.mxu0 0.0
    %520 = vmatprep.subr.mxu0 0.0
    %521 = vmatpush1.msra.mxu0 0.0
    %522 = vmatprep.subr.mxu0 0.0
    %523 = vmatpush1.msra.mxu0 0.0
    %524 = vmatprep.subr.mxu0 0.0
    %525 = vmatpush1.msra.mxu0 0.0
    %526 = vmatprep.subr.mxu0 0.0
    %527 = vmatpush1.msra.mxu0 0.0
    %528 = vmatprep.subr.mxu0 0.0
    %529 = vmatpush1.msra.mxu0 0.0
    %530 = vmatprep.subr.mxu0 0.0
    %531 = vmatpush1.msra.mxu0 0.0
    %532 = vmatprep.subr.mxu0 0.0
    %533 = vmatpush1.msra.mxu0 0.0
    %534 = vmatprep.subr.mxu0 0.0
    %535 = vmatpush1.msra.mxu0 0.0
    %536 = vmatprep.subr.mxu0 0.0
    %537 = vmatpush1.msra.mxu0 0.0
    %538 = vmatprep.subr.mxu0 0.0
    %539 = vmatpush1.msra.mxu0 0.0
    %540 = vmatprep.subr.mxu0 0.0
    %541 = vmatpush1.msra.mxu0 0.0
    %542 = vmatprep.subr.mxu0 0.0
    %543 = vmatpush1.msra.mxu0 0.0
    %544 = vmatprep.subr.mxu0 0.0
    %545 = vmatpush1.msra.mxu0 0.0
    %546 = vmatprep.subr.mxu0 0.0
    %547 = vmatpush1.msra.mxu0 0.0
    %548 = vmatprep.subr.mxu0 0.0
    %549 = vmatpush1.msra.mxu0 0.0
    %550 = vmatprep.subr.mxu0 0.0
    %551 = vmatpush1.msra.mxu0 0.0
    %552 = vmatprep.subr.mxu0 0.0
    %553 = vmatpush1.msra.mxu0 0.0
    %554 = vmatprep.subr.mxu0 0.0
    %555 = vmatpush1.msra.mxu0 0.0
    %556 = vmatprep.subr.mxu0 0.0
    %557 = vmatpush1.msra.mxu0 0.0
    %558 = vmatprep.subr.mxu0 0.0
    %559 = vmatpush1.msra.mxu0 0.0
    %560 = vmatprep.subr.mxu0 0.0
    %561 = vmatpush1.msra.mxu0 0.0
    %562 = vmatprep.subr.mxu0 0.0
    %563 = vmatpush1.msra.mxu0 0.0
    %564 = vmatprep.mubr.f32.mxu0 0.0
    %565 = vmatmul.mubr.f32.gmra.mrb[0].mxu0 %v498
    %v566 = vpop.f32.mrb[0].mxu0
    %v567 = vadd.f32 0.0, %v566
    %v568 = vpop.f32.mrb[0].mxu0
    %569 = vdwg.mxu0
    %v571 = vrot.slane %v567, 2
    %v573 = vadd.f32 %v161, %v571
    %v574 = vxor.u32 %v573, 2147483648
    %v575 = vmul.f32 %v574, 1.442695
    %v576 = vpow.pop %v575
    %v577 = vadd.f32 %v576, 1.0
    %v578 = vrcp.pop %v577
    %v579 = vmul.f32 1.0, %v578
    %v580 = vtanh.pop %v573
    %v582 = vrot.slane %v482, 6
    %v584 = vmul.f32 %v579, %v582
    %586 = vrot.lane.b32.xlu0 %v580, 64
    %v587 = vpop.permute.xlu0 %586
    %v589 = vmul.f32 %v579, %v587
    %591 = vrot.lane.b32.xlu0 %v589, 32
    %v592 = vpop.permute.xlu0 %591
    %v594 = vadd.f32 %v584, %v592
    %v595 = vtanh.pop %v594
    %597 = vrot.lane.b32.xlu0 %v595, 64
    %v598 = vpop.permute.xlu0 %597
    %v600 = vmul.f32 %v579, %v598
    %602 = vrot.lane.b32.xlu0 %v600, 32
    %v603 = vpop.permute.xlu0 %602
    %vm605 = vcmask 261126
    %606 = vst.msk [vmem:[#allocation2] sm:$0xc0] %vm605, %v603
    %v607 = vrot.slane %v600, 6
    %608 = vrot.lane.b32.xlu0 %v607, 32
    %v609 = vpop.permute.xlu0 %608
    %v610 = vsel %vm169, %v609, 0
    %612 = vmatprep.subr.mxu0 0.0
    %613 = vmatpush1.msra.mxu0 %v65
    %614 = vmatprep.subr.mxu0 0.0
    %615 = vmatpush1.msra.mxu0 %v66
    %616 = vmatprep.subr.mxu0 0.0
    %617 = vmatpush1.msra.mxu0 %v67
    %618 = vmatprep.subr.mxu0 0.0
    %619 = vmatpush1.msra.mxu0 %v68
    %620 = vmatprep.subr.mxu0 0.0
    %621 = vmatpush1.msra.mxu0 0.0
    %622 = vmatprep.subr.mxu0 0.0
    %623 = vmatpush1.msra.mxu0 0.0
    %624 = vmatprep.subr.mxu0 0.0
    %625 = vmatpush1.msra.mxu0 0.0
    %626 = vmatprep.subr.mxu0 0.0
    %627 = vmatpush1.msra.mxu0 0.0
    %628 = vmatprep.subr.mxu0 0.0
    %629 = vmatpush1.msra.mxu0 0.0
    %630 = vmatprep.subr.mxu0 0.0
    %631 = vmatpush1.msra.mxu0 0.0
    %632 = vmatprep.subr.mxu0 0.0
    %633 = vmatpush1.msra.mxu0 0.0
    %634 = vmatprep.subr.mxu0 0.0
    %635 = vmatpush1.msra.mxu0 0.0
    %636 = vmatprep.subr.mxu0 0.0
    %637 = vmatpush1.msra.mxu0 0.0
    %638 = vmatprep.subr.mxu0 0.0
    %639 = vmatpush1.msra.mxu0 0.0
    %640 = vmatprep.subr.mxu0 0.0
    %641 = vmatpush1.msra.mxu0 0.0
    %642 = vmatprep.subr.mxu0 0.0
    %643 = vmatpush1.msra.mxu0 0.0
    %644 = vmatprep.subr.mxu0 0.0
    %645 = vmatpush1.msra.mxu0 0.0
    %646 = vmatprep.subr.mxu0 0.0
    %647 = vmatpush1.msra.mxu0 0.0
    %648 = vmatprep.subr.mxu0 0.0
    %649 = vmatpush1.msra.mxu0 0.0
    %650 = vmatprep.subr.mxu0 0.0
    %651 = vmatpush1.msra.mxu0 0.0
    %652 = vmatprep.subr.mxu0 0.0
    %653 = vmatpush1.msra.mxu0 0.0
    %654 = vmatprep.subr.mxu0 0.0
    %655 = vmatpush1.msra.mxu0 0.0
    %656 = vmatprep.subr.mxu0 0.0
    %657 = vmatpush1.msra.mxu0 0.0
    %658 = vmatprep.subr.mxu0 0.0
    %659 = vmatpush1.msra.mxu0 0.0
    %660 = vmatprep.subr.mxu0 0.0
    %661 = vmatpush1.msra.mxu0 0.0
    %662 = vmatprep.subr.mxu0 0.0
    %663 = vmatpush1.msra.mxu0 0.0
    %664 = vmatprep.subr.mxu0 0.0
    %665 = vmatpush1.msra.mxu0 0.0
    %666 = vmatprep.subr.mxu0 0.0
    %667 = vmatpush1.msra.mxu0 0.0
    %668 = vmatprep.subr.mxu0 0.0
    %669 = vmatpush1.msra.mxu0 0.0
    %670 = vmatprep.subr.mxu0 0.0
    %671 = vmatpush1.msra.mxu0 0.0
    %672 = vmatprep.subr.mxu0 0.0
    %673 = vmatpush1.msra.mxu0 0.0
    %674 = vmatprep.subr.mxu0 0.0
    %675 = vmatpush1.msra.mxu0 0.0
    %676 = vmatprep.mubr.f32.mxu0 0.0
    %677 = vmatmul.mubr.f32.gmra.mrb[0].mxu0 %v610
    %v678 = vpop.f32.mrb[0].mxu0
    %v679 = vadd.f32 0.0, %v678
    %v680 = vpop.f32.mrb[0].mxu0
    %681 = vdwg.mxu0
    %v682 = vadd.f32 %v166, %v679
    %v683 = vxor.u32 %v682, 2147483648
    %v684 = vmul.f32 %v683, 1.442695
    %v685 = vpow.pop %v684
    %v686 = vadd.f32 %v685, 1.0
    %v687 = vrcp.pop %v686
    %v688 = vmul.f32 1.0, %v687
    %v689 = vtanh.pop %v682
    %v691 = vrot.slane %v594, 6
    %v693 = vmul.f32 %v688, %v691
    %695 = vrot.lane.b32.xlu0 %v689, 64
    %v696 = vpop.permute.xlu0 %695
    %v698 = vmul.f32 %v688, %v696
    %700 = vrot.lane.b32.xlu0 %v698, 32
    %v701 = vpop.permute.xlu0 %700
    %v703 = vadd.f32 %v693, %v701
    %v704 = vtanh.pop %v703
    %706 = vrot.lane.b32.xlu0 %v704, 64
    %v707 = vpop.permute.xlu0 %706
    %v709 = vmul.f32 %v688, %v707
    %711 = vrot.lane.b32.xlu0 %v709, 32
    %v712 = vpop.permute.xlu0 %711
    %714 = vst.msk [vmem:[#allocation2 + $0x8] sm:$0x3] %vm272, %v712
    %v715 = vsel %vm169, %v712, 0
    %717 = vmatprep.subr.mxu0 0.0
    %718 = vmatpush1.msra.mxu0 %v65
    %719 = vmatprep.subr.mxu0 0.0
    %720 = vmatpush1.msra.mxu0 %v66
    %721 = vmatprep.subr.mxu0 0.0
    %722 = vmatpush1.msra.mxu0 %v67
    %723 = vmatprep.subr.mxu0 0.0
    %724 = vmatpush1.msra.mxu0 %v68
    %725 = vmatprep.subr.mxu0 0.0
    %726 = vmatpush1.msra.mxu0 0.0
    %727 = vmatprep.subr.mxu0 0.0
    %728 = vmatpush1.msra.mxu0 0.0
    %729 = vmatprep.subr.mxu0 0.0
    %730 = vmatpush1.msra.mxu0 0.0
    %731 = vmatprep.subr.mxu0 0.0
    %732 = vmatpush1.msra.mxu0 0.0
    %733 = vmatprep.subr.mxu0 0.0
    %734 = vmatpush1.msra.mxu0 0.0
    %735 = vmatprep.subr.mxu0 0.0
    %736 = vmatpush1.msra.mxu0 0.0
    %737 = vmatprep.subr.mxu0 0.0
    %738 = vmatpush1.msra.mxu0 0.0
    %739 = vmatprep.subr.mxu0 0.0
    %740 = vmatpush1.msra.mxu0 0.0
    %741 = vmatprep.subr.mxu0 0.0
    %742 = vmatpush1.msra.mxu0 0.0
    %743 = vmatprep.subr.mxu0 0.0
    %744 = vmatpush1.msra.mxu0 0.0
    %745 = vmatprep.subr.mxu0 0.0
    %746 = vmatpush1.msra.mxu0 0.0
    %747 = vmatprep.subr.mxu0 0.0
    %748 = vmatpush1.msra.mxu0 0.0
    %749 = vmatprep.subr.mxu0 0.0
    %750 = vmatpush1.msra.mxu0 0.0
    %751 = vmatprep.subr.mxu0 0.0
    %752 = vmatpush1.msra.mxu0 0.0
    %753 = vmatprep.subr.mxu0 0.0
    %754 = vmatpush1.msra.mxu0 0.0
    %755 = vmatprep.subr.mxu0 0.0
    %756 = vmatpush1.msra.mxu0 0.0
    %757 = vmatprep.subr.mxu0 0.0
    %758 = vmatpush1.msra.mxu0 0.0
    %759 = vmatprep.subr.mxu0 0.0
    %760 = vmatpush1.msra.mxu0 0.0
    %761 = vmatprep.subr.mxu0 0.0
    %762 = vmatpush1.msra.mxu0 0.0
    %763 = vmatprep.subr.mxu0 0.0
    %764 = vmatpush1.msra.mxu0 0.0
    %765 = vmatprep.subr.mxu0 0.0
    %766 = vmatpush1.msra.mxu0 0.0
    %767 = vmatprep.subr.mxu0 0.0
    %768 = vmatpush1.msra.mxu0 0.0
    %769 = vmatprep.subr.mxu0 0.0
    %770 = vmatpush1.msra.mxu0 0.0
    %771 = vmatprep.subr.mxu0 0.0
    %772 = vmatpush1.msra.mxu0 0.0
    %773 = vmatprep.subr.mxu0 0.0
    %774 = vmatpush1.msra.mxu0 0.0
    %775 = vmatprep.subr.mxu0 0.0
    %776 = vmatpush1.msra.mxu0 0.0
    %777 = vmatprep.subr.mxu0 0.0
    %778 = vmatpush1.msra.mxu0 0.0
    %779 = vmatprep.subr.mxu0 0.0
    %780 = vmatpush1.msra.mxu0 0.0
    %781 = vmatprep.mubr.f32.mxu0 0.0
    %782 = vmatmul.mubr.f32.gmra.mrb[0].mxu0 %v715
    %v783 = vpop.f32.mrb[0].mxu0
    %v784 = vadd.f32 0.0, %v783
    %v785 = vpop.f32.mrb[0].mxu0
    %786 = vdwg.mxu0
    %v788 = vrot.slane %v784, 6
    %v790 = vadd.f32 %v166, %v788
    %v791 = vxor.u32 %v790, 2147483648
    %v792 = vmul.f32 %v791, 1.442695
    %v793 = vpow.pop %v792
    %v794 = vadd.f32 %v793, 1.0
    %v795 = vrcp.pop %v794
    %v796 = vmul.f32 1.0, %v795
    %v797 = vtanh.pop %v790
    %v799 = vrot.slane %v703, 6
    %v801 = vmul.f32 %v796, %v799
    %803 = vrot.lane.b32.xlu0 %v797, 64
    %v804 = vpop.permute.xlu0 %803
    %v806 = vmul.f32 %v796, %v804
    %808 = vrot.lane.b32.xlu0 %v806, 32
    %v809 = vpop.permute.xlu0 %808
    %v811 = vadd.f32 %v801, %v809
    %v812 = vtanh.pop %v811
    %814 = vrot.lane.b32.xlu0 %v812, 64
    %v815 = vpop.permute.xlu0 %814
    %v817 = vmul.f32 %v796, %v815
    %819 = vrot.lane.b32.xlu0 %v817, 32
    %v820 = vpop.permute.xlu0 %819
    %822 = vst.msk [vmem:[#allocation2 + $0x8] sm:$0xc] %vm381, %v820
    %v823 = vrot.slane %v817, 2
    %824 = vrot.lane.b32.xlu0 %v823, 32
    %v825 = vpop.permute.xlu0 %824
    %v826 = vsel %vm169, %v825, 0
    %828 = vmatprep.subr.mxu0 0.0
    %829 = vmatpush1.msra.mxu0 %v65
    %830 = vmatprep.subr.mxu0 0.0
    %831 = vmatpush1.msra.mxu0 %v66
    %832 = vmatprep.subr.mxu0 0.0
    %833 = vmatpush1.msra.mxu0 %v67
    %834 = vmatprep.subr.mxu0 0.0
    %835 = vmatpush1.msra.mxu0 %v68
    %836 = vmatprep.subr.mxu0 0.0
    %837 = vmatpush1.msra.mxu0 0.0
    %838 = vmatprep.subr.mxu0 0.0
    %839 = vmatpush1.msra.mxu0 0.0
    %840 = vmatprep.subr.mxu0 0.0
    %841 = vmatpush1.msra.mxu0 0.0
    %842 = vmatprep.subr.mxu0 0.0
    %843 = vmatpush1.msra.mxu0 0.0
    %844 = vmatprep.subr.mxu0 0.0
    %845 = vmatpush1.msra.mxu0 0.0
    %846 = vmatprep.subr.mxu0 0.0
    %847 = vmatpush1.msra.mxu0 0.0
    %848 = vmatprep.subr.mxu0 0.0
    %849 = vmatpush1.msra.mxu0 0.0
    %850 = vmatprep.subr.mxu0 0.0
    %851 = vmatpush1.msra.mxu0 0.0
    %852 = vmatprep.subr.mxu0 0.0
    %853 = vmatpush1.msra.mxu0 0.0
    %854 = vmatprep.subr.mxu0 0.0
    %855 = vmatpush1.msra.mxu0 0.0
    %856 = vmatprep.subr.mxu0 0.0
    %857 = vmatpush1.msra.mxu0 0.0
    %858 = vmatprep.subr.mxu0 0.0
    %859 = vmatpush1.msra.mxu0 0.0
    %860 = vmatprep.subr.mxu0 0.0
    %861 = vmatpush1.msra.mxu0 0.0
    %862 = vmatprep.subr.mxu0 0.0
    %863 = vmatpush1.msra.mxu0 0.0
    %864 = vmatprep.subr.mxu0 0.0
    %865 = vmatpush1.msra.mxu0 0.0
    %866 = vmatprep.subr.mxu0 0.0
    %867 = vmatpush1.msra.mxu0 0.0
    %868 = vmatprep.subr.mxu0 0.0
    %869 = vmatpush1.msra.mxu0 0.0
    %870 = vmatprep.subr.mxu0 0.0
    %871 = vmatpush1.msra.mxu0 0.0
    %872 = vmatprep.subr.mxu0 0.0
    %873 = vmatpush1.msra.mxu0 0.0
    %874 = vmatprep.subr.mxu0 0.0
    %875 = vmatpush1.msra.mxu0 0.0
    %876 = vmatprep.subr.mxu0 0.0
    %877 = vmatpush1.msra.mxu0 0.0
    %878 = vmatprep.subr.mxu0 0.0
    %879 = vmatpush1.msra.mxu0 0.0
    %880 = vmatprep.subr.mxu0 0.0
    %881 = vmatpush1.msra.mxu0 0.0
    %882 = vmatprep.subr.mxu0 0.0
    %883 = vmatpush1.msra.mxu0 0.0
    %884 = vmatprep.subr.mxu0 0.0
    %885 = vmatpush1.msra.mxu0 0.0
    %886 = vmatprep.subr.mxu0 0.0
    %887 = vmatpush1.msra.mxu0 0.0
    %888 = vmatprep.subr.mxu0 0.0
    %889 = vmatpush1.msra.mxu0 0.0
    %890 = vmatprep.subr.mxu0 0.0
    %891 = vmatpush1.msra.mxu0 0.0
    %892 = vmatprep.mubr.f32.mxu0 0.0
    %893 = vmatmul.mubr.f32.gmra.mrb[0].mxu0 %v826
    %v894 = vpop.f32.mrb[0].mxu0
    %v895 = vadd.f32 0.0, %v894
    %v896 = vpop.f32.mrb[0].mxu0
    %897 = vdwg.mxu0
    %v899 = vrot.slane %v895, 4
    %v901 = vadd.f32 %v166, %v899
    %v902 = vxor.u32 %v901, 2147483648
    %v903 = vmul.f32 %v902, 1.442695
    %v904 = vpow.pop %v903
    %v905 = vadd.f32 %v904, 1.0
    %v906 = vrcp.pop %v905
    %v907 = vmul.f32 1.0, %v906
    %v908 = vtanh.pop %v901
    %v910 = vrot.slane %v811, 6
    %v912 = vmul.f32 %v907, %v910
    %914 = vrot.lane.b32.xlu0 %v908, 64
    %v915 = vpop.permute.xlu0 %914
    %v917 = vmul.f32 %v907, %v915
    %919 = vrot.lane.b32.xlu0 %v917, 32
    %v920 = vpop.permute.xlu0 %919
    %v922 = vadd.f32 %v912, %v920
    %v923 = vtanh.pop %v922
    %925 = vrot.lane.b32.xlu0 %v923, 64
    %v926 = vpop.permute.xlu0 %925
    %v928 = vmul.f32 %v907, %v926
    %930 = vrot.lane.b32.xlu0 %v928, 32
    %v931 = vpop.permute.xlu0 %930
    %933 = vst.msk [vmem:[#allocation2 + $0x8] sm:$0x30] %vm493, %v931
    %v934 = vrot.slane %v928, 4
    %935 = vrot.lane.b32.xlu0 %v934, 32
    %v936 = vpop.permute.xlu0 %935
    %v937 = vsel %vm169, %v936, 0
    %939 = vmatprep.subr.mxu0 0.0
    %940 = vmatpush1.msra.mxu0 %v65
    %941 = vmatprep.subr.mxu0 0.0
    %942 = vmatpush1.msra.mxu0 %v66
    %943 = vmatprep.subr.mxu0 0.0
    %944 = vmatpush1.msra.mxu0 %v67
    %945 = vmatprep.subr.mxu0 0.0
    %946 = vmatpush1.msra.mxu0 %v68
    %947 = vmatprep.subr.mxu0 0.0
    %948 = vmatpush1.msra.mxu0 0.0
    %949 = vmatprep.subr.mxu0 0.0
    %950 = vmatpush1.msra.mxu0 0.0
    %951 = vmatprep.subr.mxu0 0.0
    %952 = vmatpush1.msra.mxu0 0.0
    %953 = vmatprep.subr.mxu0 0.0
    %954 = vmatpush1.msra.mxu0 0.0
    %955 = vmatprep.subr.mxu0 0.0
    %956 = vmatpush1.msra.mxu0 0.0
    %957 = vmatprep.subr.mxu0 0.0
    %958 = vmatpush1.msra.mxu0 0.0
    %959 = vmatprep.subr.mxu0 0.0
    %960 = vmatpush1.msra.mxu0 0.0
    %961 = vmatprep.subr.mxu0 0.0
    %962 = vmatpush1.msra.mxu0 0.0
    %963 = vmatprep.subr.mxu0 0.0
    %964 = vmatpush1.msra.mxu0 0.0
    %965 = vmatprep.subr.mxu0 0.0
    %966 = vmatpush1.msra.mxu0 0.0
    %967 = vmatprep.subr.mxu0 0.0
    %968 = vmatpush1.msra.mxu0 0.0
    %969 = vmatprep.subr.mxu0 0.0
    %970 = vmatpush1.msra.mxu0 0.0
    %971 = vmatprep.subr.mxu0 0.0
    %972 = vmatpush1.msra.mxu0 0.0
    %973 = vmatprep.subr.mxu0 0.0
    %974 = vmatpush1.msra.mxu0 0.0
    %975 = vmatprep.subr.mxu0 0.0
    %976 = vmatpush1.msra.mxu0 0.0
    %977 = vmatprep.subr.mxu0 0.0
    %978 = vmatpush1.msra.mxu0 0.0
    %979 = vmatprep.subr.mxu0 0.0
    %980 = vmatpush1.msra.mxu0 0.0
    %981 = vmatprep.subr.mxu0 0.0
    %982 = vmatpush1.msra.mxu0 0.0
    %983 = vmatprep.subr.mxu0 0.0
    %984 = vmatpush1.msra.mxu0 0.0
    %985 = vmatprep.subr.mxu0 0.0
    %986 = vmatpush1.msra.mxu0 0.0
    %987 = vmatprep.subr.mxu0 0.0
    %988 = vmatpush1.msra.mxu0 0.0
    %989 = vmatprep.subr.mxu0 0.0
    %990 = vmatpush1.msra.mxu0 0.0
    %991 = vmatprep.subr.mxu0 0.0
    %992 = vmatpush1.msra.mxu0 0.0
    %993 = vmatprep.subr.mxu0 0.0
    %994 = vmatpush1.msra.mxu0 0.0
    %995 = vmatprep.subr.mxu0 0.0
    %996 = vmatpush1.msra.mxu0 0.0
    %997 = vmatprep.subr.mxu0 0.0
    %998 = vmatpush1.msra.mxu0 0.0
    %999 = vmatprep.subr.mxu0 0.0
    %1000 = vmatpush1.msra.mxu0 0.0
    %1001 = vmatprep.subr.mxu0 0.0
    %1002 = vmatpush1.msra.mxu0 0.0
    %1003 = vmatprep.mubr.f32.mxu0 0.0
    %1004 = vmatmul.mubr.f32.gmra.mrb[0].mxu0 %v937
    %v1005 = vpop.f32.mrb[0].mxu0
    %v1006 = vadd.f32 0.0, %v1005
    %v1007 = vpop.f32.mrb[0].mxu0
    %1008 = vdwg.mxu0
    %v1010 = vrot.slane %v1006, 2
    %v1012 = vadd.f32 %v166, %v1010
    %v1013 = vxor.u32 %v1012, 2147483648
    %v1014 = vmul.f32 %v1013, 1.442695
    %v1015 = vpow.pop %v1014
    %v1016 = vadd.f32 %v1015, 1.0
    %v1017 = vrcp.pop %v1016
    %v1018 = vmul.f32 1.0, %v1017
    %v1019 = vtanh.pop %v1012
    %v1021 = vrot.slane %v922, 6
    %v1023 = vmul.f32 %v1018, %v1021
    %1025 = vrot.lane.b32.xlu0 %v1019, 64
    %v1026 = vpop.permute.xlu0 %1025
    %v1028 = vmul.f32 %v1018, %v1026
    %1030 = vrot.lane.b32.xlu0 %v1028, 32
    %v1031 = vpop.permute.xlu0 %1030
    %v1033 = vadd.f32 %v1023, %v1031
    %v1034 = vtanh.pop %v1033
    %1036 = vrot.lane.b32.xlu0 %v1034, 64
    %v1037 = vpop.permute.xlu0 %1036
    %v1039 = vmul.f32 %v1018, %v1037
    %1041 = vrot.lane.b32.xlu0 %v1039, 32
    %v1042 = vpop.permute.xlu0 %1041
    %1044 = vst.msk [vmem:[#allocation2 + $0x8] sm:$0xc0] %vm605, %v1042
    %v1045 = vld [vmem:[#allocation2] sm:$0xff]
    %v1046 = vld [vmem:[#allocation2 + $0x8] sm:$0xff]
    %v1047 = vld [vmem:[%s4] sm:$0xff]
    %v1048 = vld [vmem:[%s4 + $0x8] sm:$0xff]
    %v1049 = vld [vmem:[%s4 + $0x10] sm:$0xff]
    %v1050 = vld [vmem:[%s4 + $0x18] sm:$0xff]
    %v1051 = vld [vmem:[%s6] sm:$0x1]
    %v1053 = vlaneseq
    %v1054 = vshrl.u32 %v1053, 7
    %v1055 = vsub.s32 0, %v1054
    %v1056 = vrot.slane %v1051, %v1055
    %v1059 = vsel %vm169, %v1045, 0
    %v1062 = vsel %vm169, %v1046, 0
    %1064 = vmatprep.subr.mxu0 0.0
    %1065 = vmatpush1.msra.mxu0 %v1047
    %1066 = vmatprep.subr.mxu0 0.0
    %1067 = vmatpush1.msra.mxu0 %v1048
    %1068 = vmatprep.subr.mxu0 0.0
    %1069 = vmatpush1.msra.mxu0 %v1049
    %1070 = vmatprep.subr.mxu0 0.0
    %1071 = vmatpush1.msra.mxu0 %v1050
    %1072 = vmatprep.subr.mxu0 0.0
    %1073 = vmatpush1.msra.mxu0 0.0
    %1074 = vmatprep.subr.mxu0 0.0
    %1075 = vmatpush1.msra.mxu0 0.0
    %1076 = vmatprep.subr.mxu0 0.0
    %1077 = vmatpush1.msra.mxu0 0.0
    %1078 = vmatprep.subr.mxu0 0.0
    %1079 = vmatpush1.msra.mxu0 0.0
    %1080 = vmatprep.subr.mxu0 0.0
    %1081 = vmatpush1.msra.mxu0 0.0
    %1082 = vmatprep.subr.mxu0 0.0
    %1083 = vmatpush1.msra.mxu0 0.0
    %1084 = vmatprep.subr.mxu0 0.0
    %1085 = vmatpush1.msra.mxu0 0.0
    %1086 = vmatprep.subr.mxu0 0.0
    %1087 = vmatpush1.msra.mxu0 0.0
    %1088 = vmatprep.subr.mxu0 0.0
    %1089 = vmatpush1.msra.mxu0 0.0
    %1090 = vmatprep.subr.mxu0 0.0
    %1091 = vmatpush1.msra.mxu0 0.0
    %1092 = vmatprep.subr.mxu0 0.0
    %1093 = vmatpush1.msra.mxu0 0.0
    %1094 = vmatprep.subr.mxu0 0.0
    %1095 = vmatpush1.msra.mxu0 0.0
    %1096 = vmatprep.subr.mxu0 0.0
    %1097 = vmatpush1.msra.mxu0 0.0
    %1098 = vmatprep.subr.mxu0 0.0
    %1099 = vmatpush1.msra.mxu0 0.0
    %1100 = vmatprep.subr.mxu0 0.0
    %1101 = vmatpush1.msra.mxu0 0.0
    %1102 = vmatprep.subr.mxu0 0.0
    %1103 = vmatpush1.msra.mxu0 0.0
    %1104 = vmatprep.subr.mxu0 0.0
    %1105 = vmatpush1.msra.mxu0 0.0
    %1106 = vmatprep.subr.mxu0 0.0
    %1107 = vmatpush1.msra.mxu0 0.0
    %1108 = vmatprep.subr.mxu0 0.0
    %1109 = vmatpush1.msra.mxu0 0.0
    %1110 = vmatprep.subr.mxu0 0.0
    %1111 = vmatpush1.msra.mxu0 0.0
    %1112 = vmatprep.subr.mxu0 0.0
    %1113 = vmatpush1.msra.mxu0 0.0
    %1114 = vmatprep.subr.mxu0 0.0
    %1115 = vmatpush1.msra.mxu0 0.0
    %1116 = vmatprep.subr.mxu0 0.0
    %1117 = vmatpush1.msra.mxu0 0.0
    %1118 = vmatprep.subr.mxu0 0.0
    %1119 = vmatpush1.msra.mxu0 0.0
    %1120 = vmatprep.subr.mxu0 0.0
    %1121 = vmatpush1.msra.mxu0 0.0
    %1122 = vmatprep.subr.mxu0 0.0
    %1123 = vmatpush1.msra.mxu0 0.0
    %1124 = vmatprep.subr.mxu0 0.0
    %1125 = vmatpush1.msra.mxu0 0.0
    %1126 = vmatprep.subr.mxu0 0.0
    %1127 = vmatpush1.msra.mxu0 0.0
    %1128 = vmatprep.mubr.f32.mxu0 0.0
    %1129 = vmatmul.mubr.f32.gmra.mrb[0].mxu0 %v1059
    %v1130 = vpop.f32.mrb[0].mxu0
    %v1131 = vadd.f32 %v1056, %v1130
    %v1132 = vpop.f32.mrb[0].mxu0
    %1133 = vmatprep.mubr.f32.mxu0 0.0
    %1134 = vmatmul.mubr.f32.gmra.mrb[0].mxu0 %v1062
    %v1135 = vpop.f32.mrb[0].mxu0
    %v1136 = vadd.f32 %v1056, %v1135
    %v1137 = vpop.f32.mrb[0].mxu0
    %1138 = vdwg.mxu0
    %1139 = vmatprep.subr.mxu0 0.0
    %1140 = vmatpush1.msra.mxu0 %v69
    %1141 = vmatprep.subr.mxu0 0.0
    %1142 = vmatpush1.msra.mxu0 %v70
    %1143 = vmatprep.subr.mxu0 0.0
    %1144 = vmatpush1.msra.mxu0 %v71
    %1145 = vmatprep.subr.mxu0 0.0
    %1146 = vmatpush1.msra.mxu0 %v72
    %1147 = vmatprep.subr.mxu0 0.0
    %1148 = vmatpush1.msra.mxu0 0.0
    %1149 = vmatprep.subr.mxu0 0.0
    %1150 = vmatpush1.msra.mxu0 0.0
    %1151 = vmatprep.subr.mxu0 0.0
    %1152 = vmatpush1.msra.mxu0 0.0
    %1153 = vmatprep.subr.mxu0 0.0
    %1154 = vmatpush1.msra.mxu0 0.0
    %1155 = vmatprep.subr.mxu0 0.0
    %1156 = vmatpush1.msra.mxu0 0.0
    %1157 = vmatprep.subr.mxu0 0.0
    %1158 = vmatpush1.msra.mxu0 0.0
    %1159 = vmatprep.subr.mxu0 0.0
    %1160 = vmatpush1.msra.mxu0 0.0
    %1161 = vmatprep.subr.mxu0 0.0
    %1162 = vmatpush1.msra.mxu0 0.0
    %1163 = vmatprep.subr.mxu0 0.0
    %1164 = vmatpush1.msra.mxu0 0.0
    %1165 = vmatprep.subr.mxu0 0.0
    %1166 = vmatpush1.msra.mxu0 0.0
    %1167 = vmatprep.subr.mxu0 0.0
    %1168 = vmatpush1.msra.mxu0 0.0
    %1169 = vmatprep.subr.mxu0 0.0
    %1170 = vmatpush1.msra.mxu0 0.0
    %1171 = vmatprep.subr.mxu0 0.0
    %1172 = vmatpush1.msra.mxu0 0.0
    %1173 = vmatprep.subr.mxu0 0.0
    %1174 = vmatpush1.msra.mxu0 0.0
    %1175 = vmatprep.subr.mxu0 0.0
    %1176 = vmatpush1.msra.mxu0 0.0
    %1177 = vmatprep.subr.mxu0 0.0
    %1178 = vmatpush1.msra.mxu0 0.0
    %1179 = vmatprep.subr.mxu0 0.0
    %1180 = vmatpush1.msra.mxu0 0.0
    %1181 = vmatprep.subr.mxu0 0.0
    %1182 = vmatpush1.msra.mxu0 0.0
    %1183 = vmatprep.subr.mxu0 0.0
    %1184 = vmatpush1.msra.mxu0 0.0
    %1185 = vmatprep.subr.mxu0 0.0
    %1186 = vmatpush1.msra.mxu0 0.0
    %1187 = vmatprep.subr.mxu0 0.0
    %1188 = vmatpush1.msra.mxu0 0.0
    %1189 = vmatprep.subr.mxu0 0.0
    %1190 = vmatpush1.msra.mxu0 0.0
    %1191 = vmatprep.subr.mxu0 0.0
    %1192 = vmatpush1.msra.mxu0 0.0
    %1193 = vmatprep.subr.mxu0 0.0
    %1194 = vmatpush1.msra.mxu0 0.0
    %1195 = vmatprep.subr.mxu0 0.0
    %1196 = vmatpush1.msra.mxu0 0.0
    %1197 = vmatprep.subr.mxu0 0.0
    %1198 = vmatpush1.msra.mxu0 0.0
    %1199 = vmatprep.subr.mxu0 0.0
    %1200 = vmatpush1.msra.mxu0 0.0
    %1201 = vmatprep.subr.mxu0 0.0
    %1202 = vmatpush1.msra.mxu0 0.0
    %1203 = vmatprep.mubr.f32.mxu0 0.0
    %1204 = vmatmul.mubr.f32.gmra.mrb[0].mxu0 %v171
    %v1205 = vpop.f32.mrb[0].mxu0
    %v1206 = vadd.f32 0.0, %v1205
    %v1207 = vpop.f32.mrb[0].mxu0
    %1208 = vdwg.mxu0
    %v1209 = vadd.f32 %v1131, %v1206
    %v1210 = vxor.u32 %v1209, 2147483648
    %v1211 = vmul.f32 %v1210, 1.442695
    %v1212 = vpow.pop %v1211
    %v1213 = vadd.f32 %v1212, 1.0
    %v1214 = vrcp.pop %v1213
    %v1215 = vmul.f32 1.0, %v1214
    %v1216 = vtanh.pop %v1209
    %v1217 = vmul.f32 %v1215, 0.0
    %1219 = vrot.lane.b32.xlu0 %v1216, 64
    %v1220 = vpop.permute.xlu0 %1219
    %v1222 = vmul.f32 %v1215, %v1220
    %1224 = vrot.lane.b32.xlu0 %v1222, 32
    %v1225 = vpop.permute.xlu0 %1224
    %v1227 = vadd.f32 %v1217, %v1225
    %v1228 = vtanh.pop %v1227
    %1230 = vrot.lane.b32.xlu0 %v1228, 64
    %v1231 = vpop.permute.xlu0 %1230
    %v1233 = vmul.f32 %v1215, %v1231
    %1235 = vrot.lane.b32.xlu0 %v1233, 32
    %v1236 = vpop.permute.xlu0 %1235
    %v1237 = vsel %vm169, %v1236, 0
    %1239 = vmatprep.subr.mxu0 0.0
    %1240 = vmatpush1.msra.mxu0 %v69
    %1241 = vmatprep.subr.mxu0 0.0
    %1242 = vmatpush1.msra.mxu0 %v70
    %1243 = vmatprep.subr.mxu0 0.0
    %1244 = vmatpush1.msra.mxu0 %v71
    %1245 = vmatprep.subr.mxu0 0.0
    %1246 = vmatpush1.msra.mxu0 %v72
    %1247 = vmatprep.subr.mxu0 0.0
    %1248 = vmatpush1.msra.mxu0 0.0
    %1249 = vmatprep.subr.mxu0 0.0
    %1250 = vmatpush1.msra.mxu0 0.0
    %1251 = vmatprep.subr.mxu0 0.0
    %1252 = vmatpush1.msra.mxu0 0.0
    %1253 = vmatprep.subr.mxu0 0.0
    %1254 = vmatpush1.msra.mxu0 0.0
    %1255 = vmatprep.subr.mxu0 0.0
    %1256 = vmatpush1.msra.mxu0 0.0
    %1257 = vmatprep.subr.mxu0 0.0
    %1258 = vmatpush1.msra.mxu0 0.0
    %1259 = vmatprep.subr.mxu0 0.0
    %1260 = vmatpush1.msra.mxu0 0.0
    %1261 = vmatprep.subr.mxu0 0.0
    %1262 = vmatpush1.msra.mxu0 0.0
    %1263 = vmatprep.subr.mxu0 0.0
    %1264 = vmatpush1.msra.mxu0 0.0
    %1265 = vmatprep.subr.mxu0 0.0
    %1266 = vmatpush1.msra.mxu0 0.0
    %1267 = vmatprep.subr.mxu0 0.0
    %1268 = vmatpush1.msra.mxu0 0.0
    %1269 = vmatprep.subr.mxu0 0.0
    %1270 = vmatpush1.msra.mxu0 0.0
    %1271 = vmatprep.subr.mxu0 0.0
    %1272 = vmatpush1.msra.mxu0 0.0
    %1273 = vmatprep.subr.mxu0 0.0
    %1274 = vmatpush1.msra.mxu0 0.0
    %1275 = vmatprep.subr.mxu0 0.0
    %1276 = vmatpush1.msra.mxu0 0.0
    %1277 = vmatprep.subr.mxu0 0.0
    %1278 = vmatpush1.msra.mxu0 0.0
    %1279 = vmatprep.subr.mxu0 0.0
    %1280 = vmatpush1.msra.mxu0 0.0
    %1281 = vmatprep.subr.mxu0 0.0
    %1282 = vmatpush1.msra.mxu0 0.0
    %1283 = vmatprep.subr.mxu0 0.0
    %1284 = vmatpush1.msra.mxu0 0.0
    %1285 = vmatprep.subr.mxu0 0.0
    %1286 = vmatpush1.msra.mxu0 0.0
    %1287 = vmatprep.subr.mxu0 0.0
    %1288 = vmatpush1.msra.mxu0 0.0
    %1289 = vmatprep.subr.mxu0 0.0
    %1290 = vmatpush1.msra.mxu0 0.0
    %1291 = vmatprep.subr.mxu0 0.0
    %1292 = vmatpush1.msra.mxu0 0.0
    %1293 = vmatprep.subr.mxu0 0.0
    %1294 = vmatpush1.msra.mxu0 0.0
    %1295 = vmatprep.subr.mxu0 0.0
    %1296 = vmatpush1.msra.mxu0 0.0
    %1297 = vmatprep.subr.mxu0 0.0
    %1298 = vmatpush1.msra.mxu0 0.0
    %1299 = vmatprep.subr.mxu0 0.0
    %1300 = vmatpush1.msra.mxu0 0.0
    %1301 = vmatprep.subr.mxu0 0.0
    %1302 = vmatpush1.msra.mxu0 0.0
    %1303 = vmatprep.mubr.f32.mxu0 0.0
    %1304 = vmatmul.mubr.f32.gmra.mrb[0].mxu0 %v1237
    %v1305 = vpop.f32.mrb[0].mxu0
    %v1306 = vadd.f32 0.0, %v1305
    %v1307 = vpop.f32.mrb[0].mxu0
    %1308 = vdwg.mxu0
    %v1310 = vrot.slane %v1306, 6
    %v1312 = vadd.f32 %v1131, %v1310
    %v1313 = vxor.u32 %v1312, 2147483648
    %v1314 = vmul.f32 %v1313, 1.442695
    %v1315 = vpow.pop %v1314
    %v1316 = vadd.f32 %v1315, 1.0
    %v1317 = vrcp.pop %v1316
    %v1318 = vmul.f32 1.0, %v1317
    %v1319 = vtanh.pop %v1312
    %v1321 = vrot.slane %v1227, 6
    %v1323 = vmul.f32 %v1318, %v1321
    %1325 = vrot.lane.b32.xlu0 %v1319, 64
    %v1326 = vpop.permute.xlu0 %1325
    %v1328 = vmul.f32 %v1318, %v1326
    %1330 = vrot.lane.b32.xlu0 %v1328, 32
    %v1331 = vpop.permute.xlu0 %1330
    %v1333 = vadd.f32 %v1323, %v1331
    %v1334 = vtanh.pop %v1333
    %1336 = vrot.lane.b32.xlu0 %v1334, 64
    %v1337 = vpop.permute.xlu0 %1336
    %v1339 = vmul.f32 %v1318, %v1337
    %v1341 = vrot.slane %v1339, 2
    %1342 = vrot.lane.b32.xlu0 %v1341, 32
    %v1343 = vpop.permute.xlu0 %1342
    %v1344 = vsel %vm169, %v1343, 0
    %1346 = vmatprep.subr.mxu0 0.0
    %1347 = vmatpush1.msra.mxu0 %v69
    %1348 = vmatprep.subr.mxu0 0.0
    %1349 = vmatpush1.msra.mxu0 %v70
    %1350 = vmatprep.subr.mxu0 0.0
    %1351 = vmatpush1.msra.mxu0 %v71
    %1352 = vmatprep.subr.mxu0 0.0
    %1353 = vmatpush1.msra.mxu0 %v72
    %1354 = vmatprep.subr.mxu0 0.0
    %1355 = vmatpush1.msra.mxu0 0.0
    %1356 = vmatprep.subr.mxu0 0.0
    %1357 = vmatpush1.msra.mxu0 0.0
    %1358 = vmatprep.subr.mxu0 0.0
    %1359 = vmatpush1.msra.mxu0 0.0
    %1360 = vmatprep.subr.mxu0 0.0
    %1361 = vmatpush1.msra.mxu0 0.0
    %1362 = vmatprep.subr.mxu0 0.0
    %1363 = vmatpush1.msra.mxu0 0.0
    %1364 = vmatprep.subr.mxu0 0.0
    %1365 = vmatpush1.msra.mxu0 0.0
    %1366 = vmatprep.subr.mxu0 0.0
    %1367 = vmatpush1.msra.mxu0 0.0
    %1368 = vmatprep.subr.mxu0 0.0
    %1369 = vmatpush1.msra.mxu0 0.0
    %1370 = vmatprep.subr.mxu0 0.0
    %1371 = vmatpush1.msra.mxu0 0.0
    %1372 = vmatprep.subr.mxu0 0.0
    %1373 = vmatpush1.msra.mxu0 0.0
    %1374 = vmatprep.subr.mxu0 0.0
    %1375 = vmatpush1.msra.mxu0 0.0
    %1376 = vmatprep.subr.mxu0 0.0
    %1377 = vmatpush1.msra.mxu0 0.0
    %1378 = vmatprep.subr.mxu0 0.0
    %1379 = vmatpush1.msra.mxu0 0.0
    %1380 = vmatprep.subr.mxu0 0.0
    %1381 = vmatpush1.msra.mxu0 0.0
    %1382 = vmatprep.subr.mxu0 0.0
    %1383 = vmatpush1.msra.mxu0 0.0
    %1384 = vmatprep.subr.mxu0 0.0
    %1385 = vmatpush1.msra.mxu0 0.0
    %1386 = vmatprep.subr.mxu0 0.0
    %1387 = vmatpush1.msra.mxu0 0.0
    %1388 = vmatprep.subr.mxu0 0.0
    %1389 = vmatpush1.msra.mxu0 0.0
    %1390 = vmatprep.subr.mxu0 0.0
    %1391 = vmatpush1.msra.mxu0 0.0
    %1392 = vmatprep.subr.mxu0 0.0
    %1393 = vmatpush1.msra.mxu0 0.0
    %1394 = vmatprep.subr.mxu0 0.0
    %1395 = vmatpush1.msra.mxu0 0.0
    %1396 = vmatprep.subr.mxu0 0.0
    %1397 = vmatpush1.msra.mxu0 0.0
    %1398 = vmatprep.subr.mxu0 0.0
    %1399 = vmatpush1.msra.mxu0 0.0
    %1400 = vmatprep.subr.mxu0 0.0
    %1401 = vmatpush1.msra.mxu0 0.0
    %1402 = vmatprep.subr.mxu0 0.0
    %1403 = vmatpush1.msra.mxu0 0.0
    %1404 = vmatprep.subr.mxu0 0.0
    %1405 = vmatpush1.msra.mxu0 0.0
    %1406 = vmatprep.subr.mxu0 0.0
    %1407 = vmatpush1.msra.mxu0 0.0
    %1408 = vmatprep.subr.mxu0 0.0
    %1409 = vmatpush1.msra.mxu0 0.0
    %1410 = vmatprep.mubr.f32.mxu0 0.0
    %1411 = vmatmul.mubr.f32.gmra.mrb[0].mxu0 %v1344
    %v1412 = vpop.f32.mrb[0].mxu0
    %v1413 = vadd.f32 0.0, %v1412
    %v1414 = vpop.f32.mrb[0].mxu0
    %1415 = vdwg.mxu0
    %v1417 = vrot.slane %v1413, 4
    %v1419 = vadd.f32 %v1131, %v1417
    %v1420 = vxor.u32 %v1419, 2147483648
    %v1421 = vmul.f32 %v1420, 1.442695
    %v1422 = vpow.pop %v1421
    %v1423 = vadd.f32 %v1422, 1.0
    %v1424 = vrcp.pop %v1423
    %v1425 = vmul.f32 1.0, %v1424
    %v1426 = vtanh.pop %v1419
    %v1428 = vrot.slane %v1333, 6
    %v1430 = vmul.f32 %v1425, %v1428
    %1432 = vrot.lane.b32.xlu0 %v1426, 64
    %v1433 = vpop.permute.xlu0 %1432
    %v1435 = vmul.f32 %v1425, %v1433
    %1437 = vrot.lane.b32.xlu0 %v1435, 32
    %v1438 = vpop.permute.xlu0 %1437
    %v1440 = vadd.f32 %v1430, %v1438
    %v1441 = vtanh.pop %v1440
    %1443 = vrot.lane.b32.xlu0 %v1441, 64
    %v1444 = vpop.permute.xlu0 %1443
    %v1446 = vmul.f32 %v1425, %v1444
    %v1448 = vrot.slane %v1446, 4
    %1449 = vrot.lane.b32.xlu0 %v1448, 32
    %v1450 = vpop.permute.xlu0 %1449
    %v1451 = vsel %vm169, %v1450, 0
    %1453 = vmatprep.subr.mxu0 0.0
    %1454 = vmatpush1.msra.mxu0 %v69
    %1455 = vmatprep.subr.mxu0 0.0
    %1456 = vmatpush1.msra.mxu0 %v70
    %1457 = vmatprep.subr.mxu0 0.0
    %1458 = vmatpush1.msra.mxu0 %v71
    %1459 = vmatprep.subr.mxu0 0.0
    %1460 = vmatpush1.msra.mxu0 %v72
    %1461 = vmatprep.subr.mxu0 0.0
    %1462 = vmatpush1.msra.mxu0 0.0
    %1463 = vmatprep.subr.mxu0 0.0
    %1464 = vmatpush1.msra.mxu0 0.0
    %1465 = vmatprep.subr.mxu0 0.0
    %1466 = vmatpush1.msra.mxu0 0.0
    %1467 = vmatprep.subr.mxu0 0.0
    %1468 = vmatpush1.msra.mxu0 0.0
    %1469 = vmatprep.subr.mxu0 0.0
    %1470 = vmatpush1.msra.mxu0 0.0
    %1471 = vmatprep.subr.mxu0 0.0
    %1472 = vmatpush1.msra.mxu0 0.0
    %1473 = vmatprep.subr.mxu0 0.0
    %1474 = vmatpush1.msra.mxu0 0.0
    %1475 = vmatprep.subr.mxu0 0.0
    %1476 = vmatpush1.msra.mxu0 0.0
    %1477 = vmatprep.subr.mxu0 0.0
    %1478 = vmatpush1.msra.mxu0 0.0
    %1479 = vmatprep.subr.mxu0 0.0
    %1480 = vmatpush1.msra.mxu0 0.0
    %1481 = vmatprep.subr.mxu0 0.0
    %1482 = vmatpush1.msra.mxu0 0.0
    %1483 = vmatprep.subr.mxu0 0.0
    %1484 = vmatpush1.msra.mxu0 0.0
    %1485 = vmatprep.subr.mxu0 0.0
    %1486 = vmatpush1.msra.mxu0 0.0
    %1487 = vmatprep.subr.mxu0 0.0
    %1488 = vmatpush1.msra.mxu0 0.0
    %1489 = vmatprep.subr.mxu0 0.0
    %1490 = vmatpush1.msra.mxu0 0.0
    %1491 = vmatprep.subr.mxu0 0.0
    %1492 = vmatpush1.msra.mxu0 0.0
    %1493 = vmatprep.subr.mxu0 0.0
    %1494 = vmatpush1.msra.mxu0 0.0
    %1495 = vmatprep.subr.mxu0 0.0
    %1496 = vmatpush1.msra.mxu0 0.0
    %1497 = vmatprep.subr.mxu0 0.0
    %1498 = vmatpush1.msra.mxu0 0.0
    %1499 = vmatprep.subr.mxu0 0.0
    %1500 = vmatpush1.msra.mxu0 0.0
    %1501 = vmatprep.subr.mxu0 0.0
    %1502 = vmatpush1.msra.mxu0 0.0
    %1503 = vmatprep.subr.mxu0 0.0
    %1504 = vmatpush1.msra.mxu0 0.0
    %1505 = vmatprep.subr.mxu0 0.0
    %1506 = vmatpush1.msra.mxu0 0.0
    %1507 = vmatprep.subr.mxu0 0.0
    %1508 = vmatpush1.msra.mxu0 0.0
    %1509 = vmatprep.subr.mxu0 0.0
    %1510 = vmatpush1.msra.mxu0 0.0
    %1511 = vmatprep.subr.mxu0 0.0
    %1512 = vmatpush1.msra.mxu0 0.0
    %1513 = vmatprep.subr.mxu0 0.0
    %1514 = vmatpush1.msra.mxu0 0.0
    %1515 = vmatprep.subr.mxu0 0.0
    %1516 = vmatpush1.msra.mxu0 0.0
    %1517 = vmatprep.mubr.f32.mxu0 0.0
    %1518 = vmatmul.mubr.f32.gmra.mrb[0].mxu0 %v1451
    %v1519 = vpop.f32.mrb[0].mxu0
    %v1520 = vadd.f32 0.0, %v1519
    %v1521 = vpop.f32.mrb[0].mxu0
    %1522 = vdwg.mxu0
    %v1524 = vrot.slane %v1520, 2
    %v1526 = vadd.f32 %v1131, %v1524
    %v1527 = vxor.u32 %v1526, 2147483648
    %v1528 = vmul.f32 %v1527, 1.442695
    %v1529 = vpow.pop %v1528
    %v1530 = vadd.f32 %v1529, 1.0
    %v1531 = vrcp.pop %v1530
    %v1532 = vmul.f32 1.0, %v1531
    %v1533 = vtanh.pop %v1526
    %v1535 = vrot.slane %v1440, 6
    %v1537 = vmul.f32 %v1532, %v1535
    %1539 = vrot.lane.b32.xlu0 %v1533, 64
    %v1540 = vpop.permute.xlu0 %1539
    %v1542 = vmul.f32 %v1532, %v1540
    %1544 = vrot.lane.b32.xlu0 %v1542, 32
    %v1545 = vpop.permute.xlu0 %1544
    %v1547 = vadd.f32 %v1537, %v1545
    %v1548 = vtanh.pop %v1547
    %1550 = vrot.lane.b32.xlu0 %v1548, 64
    %v1551 = vpop.permute.xlu0 %1550
    %v1553 = vmul.f32 %v1532, %v1551
    %v1555 = vrot.slane %v1553, 6
    %1556 = vrot.lane.b32.xlu0 %v1555, 32
    %v1557 = vpop.permute.xlu0 %1556
    %v1558 = vsel %vm169, %v1557, 0
    %1560 = vmatprep.subr.mxu0 0.0
    %1561 = vmatpush1.msra.mxu0 %v69
    %1562 = vmatprep.subr.mxu0 0.0
    %1563 = vmatpush1.msra.mxu0 %v70
    %1564 = vmatprep.subr.mxu0 0.0
    %1565 = vmatpush1.msra.mxu0 %v71
    %1566 = vmatprep.subr.mxu0 0.0
    %1567 = vmatpush1.msra.mxu0 %v72
    %1568 = vmatprep.subr.mxu0 0.0
    %1569 = vmatpush1.msra.mxu0 0.0
    %1570 = vmatprep.subr.mxu0 0.0
    %1571 = vmatpush1.msra.mxu0 0.0
    %1572 = vmatprep.subr.mxu0 0.0
    %1573 = vmatpush1.msra.mxu0 0.0
    %1574 = vmatprep.subr.mxu0 0.0
    %1575 = vmatpush1.msra.mxu0 0.0
    %1576 = vmatprep.subr.mxu0 0.0
    %1577 = vmatpush1.msra.mxu0 0.0
    %1578 = vmatprep.subr.mxu0 0.0
    %1579 = vmatpush1.msra.mxu0 0.0
    %1580 = vmatprep.subr.mxu0 0.0
    %1581 = vmatpush1.msra.mxu0 0.0
    %1582 = vmatprep.subr.mxu0 0.0
    %1583 = vmatpush1.msra.mxu0 0.0
    %1584 = vmatprep.subr.mxu0 0.0
    %1585 = vmatpush1.msra.mxu0 0.0
    %1586 = vmatprep.subr.mxu0 0.0
    %1587 = vmatpush1.msra.mxu0 0.0
    %1588 = vmatprep.subr.mxu0 0.0
    %1589 = vmatpush1.msra.mxu0 0.0
    %1590 = vmatprep.subr.mxu0 0.0
    %1591 = vmatpush1.msra.mxu0 0.0
    %1592 = vmatprep.subr.mxu0 0.0
    %1593 = vmatpush1.msra.mxu0 0.0
    %1594 = vmatprep.subr.mxu0 0.0
    %1595 = vmatpush1.msra.mxu0 0.0
    %1596 = vmatprep.subr.mxu0 0.0
    %1597 = vmatpush1.msra.mxu0 0.0
    %1598 = vmatprep.subr.mxu0 0.0
    %1599 = vmatpush1.msra.mxu0 0.0
    %1600 = vmatprep.subr.mxu0 0.0
    %1601 = vmatpush1.msra.mxu0 0.0
    %1602 = vmatprep.subr.mxu0 0.0
    %1603 = vmatpush1.msra.mxu0 0.0
    %1604 = vmatprep.subr.mxu0 0.0
    %1605 = vmatpush1.msra.mxu0 0.0
    %1606 = vmatprep.subr.mxu0 0.0
    %1607 = vmatpush1.msra.mxu0 0.0
    %1608 = vmatprep.subr.mxu0 0.0
    %1609 = vmatpush1.msra.mxu0 0.0
    %1610 = vmatprep.subr.mxu0 0.0
    %1611 = vmatpush1.msra.mxu0 0.0
    %1612 = vmatprep.subr.mxu0 0.0
    %1613 = vmatpush1.msra.mxu0 0.0
    %1614 = vmatprep.subr.mxu0 0.0
    %1615 = vmatpush1.msra.mxu0 0.0
    %1616 = vmatprep.subr.mxu0 0.0
    %1617 = vmatpush1.msra.mxu0 0.0
    %1618 = vmatprep.subr.mxu0 0.0
    %1619 = vmatpush1.msra.mxu0 0.0
    %1620 = vmatprep.subr.mxu0 0.0
    %1621 = vmatpush1.msra.mxu0 0.0
    %1622 = vmatprep.subr.mxu0 0.0
    %1623 = vmatpush1.msra.mxu0 0.0
    %1624 = vmatprep.mubr.f32.mxu0 0.0
    %1625 = vmatmul.mubr.f32.gmra.mrb[0].mxu0 %v1558
    %v1626 = vpop.f32.mrb[0].mxu0
    %v1627 = vadd.f32 0.0, %v1626
    %v1628 = vpop.f32.mrb[0].mxu0
    %1629 = vdwg.mxu0
    %v1630 = vadd.f32 %v1136, %v1627
    %v1631 = vxor.u32 %v1630, 2147483648
    %v1632 = vmul.f32 %v1631, 1.442695
    %v1633 = vpow.pop %v1632
    %v1634 = vadd.f32 %v1633, 1.0
    %v1635 = vrcp.pop %v1634
    %v1636 = vmul.f32 1.0, %v1635
    %v1637 = vtanh.pop %v1630
    %v1639 = vrot.slane %v1547, 6
    %v1641 = vmul.f32 %v1636, %v1639
    %1643 = vrot.lane.b32.xlu0 %v1637, 64
    %v1644 = vpop.permute.xlu0 %1643
    %v1646 = vmul.f32 %v1636, %v1644
    %1648 = vrot.lane.b32.xlu0 %v1646, 32
    %v1649 = vpop.permute.xlu0 %1648
    %v1651 = vadd.f32 %v1641, %v1649
    %v1652 = vtanh.pop %v1651
    %1654 = vrot.lane.b32.xlu0 %v1652, 64
    %v1655 = vpop.permute.xlu0 %1654
    %v1657 = vmul.f32 %v1636, %v1655
    %1659 = vrot.lane.b32.xlu0 %v1657, 32
    %v1660 = vpop.permute.xlu0 %1659
    %v1661 = vsel %vm169, %v1660, 0
    %1663 = vmatprep.subr.mxu0 0.0
    %1664 = vmatpush1.msra.mxu0 %v69
    %1665 = vmatprep.subr.mxu0 0.0
    %1666 = vmatpush1.msra.mxu0 %v70
    %1667 = vmatprep.subr.mxu0 0.0
    %1668 = vmatpush1.msra.mxu0 %v71
    %1669 = vmatprep.subr.mxu0 0.0
    %1670 = vmatpush1.msra.mxu0 %v72
    %1671 = vmatprep.subr.mxu0 0.0
    %1672 = vmatpush1.msra.mxu0 0.0
    %1673 = vmatprep.subr.mxu0 0.0
    %1674 = vmatpush1.msra.mxu0 0.0
    %1675 = vmatprep.subr.mxu0 0.0
    %1676 = vmatpush1.msra.mxu0 0.0
    %1677 = vmatprep.subr.mxu0 0.0
    %1678 = vmatpush1.msra.mxu0 0.0
    %1679 = vmatprep.subr.mxu0 0.0
    %1680 = vmatpush1.msra.mxu0 0.0
    %1681 = vmatprep.subr.mxu0 0.0
    %1682 = vmatpush1.msra.mxu0 0.0
    %1683 = vmatprep.subr.mxu0 0.0
    %1684 = vmatpush1.msra.mxu0 0.0
    %1685 = vmatprep.subr.mxu0 0.0
    %1686 = vmatpush1.msra.mxu0 0.0
    %1687 = vmatprep.subr.mxu0 0.0
    %1688 = vmatpush1.msra.mxu0 0.0
    %1689 = vmatprep.subr.mxu0 0.0
    %1690 = vmatpush1.msra.mxu0 0.0
    %1691 = vmatprep.subr.mxu0 0.0
    %1692 = vmatpush1.msra.mxu0 0.0
    %1693 = vmatprep.subr.mxu0 0.0
    %1694 = vmatpush1.msra.mxu0 0.0
    %1695 = vmatprep.subr.mxu0 0.0
    %1696 = vmatpush1.msra.mxu0 0.0
    %1697 = vmatprep.subr.mxu0 0.0
    %1698 = vmatpush1.msra.mxu0 0.0
    %1699 = vmatprep.subr.mxu0 0.0
    %1700 = vmatpush1.msra.mxu0 0.0
    %1701 = vmatprep.subr.mxu0 0.0
    %1702 = vmatpush1.msra.mxu0 0.0
    %1703 = vmatprep.subr.mxu0 0.0
    %1704 = vmatpush1.msra.mxu0 0.0
    %1705 = vmatprep.subr.mxu0 0.0
    %1706 = vmatpush1.msra.mxu0 0.0
    %1707 = vmatprep.subr.mxu0 0.0
    %1708 = vmatpush1.msra.mxu0 0.0
    %1709 = vmatprep.subr.mxu0 0.0
    %1710 = vmatpush1.msra.mxu0 0.0
    %1711 = vmatprep.subr.mxu0 0.0
    %1712 = vmatpush1.msra.mxu0 0.0
    %1713 = vmatprep.subr.mxu0 0.0
    %1714 = vmatpush1.msra.mxu0 0.0
    %1715 = vmatprep.subr.mxu0 0.0
    %1716 = vmatpush1.msra.mxu0 0.0
    %1717 = vmatprep.subr.mxu0 0.0
    %1718 = vmatpush1.msra.mxu0 0.0
    %1719 = vmatprep.subr.mxu0 0.0
    %1720 = vmatpush1.msra.mxu0 0.0
    %1721 = vmatprep.subr.mxu0 0.0
    %1722 = vmatpush1.msra.mxu0 0.0
    %1723 = vmatprep.subr.mxu0 0.0
    %1724 = vmatpush1.msra.mxu0 0.0
    %1725 = vmatprep.subr.mxu0 0.0
    %1726 = vmatpush1.msra.mxu0 0.0
    %1727 = vmatprep.mubr.f32.mxu0 0.0
    %1728 = vmatmul.mubr.f32.gmra.mrb[0].mxu0 %v1661
    %v1729 = vpop.f32.mrb[0].mxu0
    %v1730 = vadd.f32 0.0, %v1729
    %v1731 = vpop.f32.mrb[0].mxu0
    %1732 = vdwg.mxu0
    %v1734 = vrot.slane %v1730, 6
    %v1736 = vadd.f32 %v1136, %v1734
    %v1737 = vxor.u32 %v1736, 2147483648
    %v1738 = vmul.f32 %v1737, 1.442695
    %v1739 = vpow.pop %v1738
    %v1740 = vadd.f32 %v1739, 1.0
    %v1741 = vrcp.pop %v1740
    %v1742 = vmul.f32 1.0, %v1741
    %v1743 = vtanh.pop %v1736
    %v1745 = vrot.slane %v1651, 6
    %v1747 = vmul.f32 %v1742, %v1745
    %1749 = vrot.lane.b32.xlu0 %v1743, 64
    %v1750 = vpop.permute.xlu0 %1749
    %v1752 = vmul.f32 %v1742, %v1750
    %1754 = vrot.lane.b32.xlu0 %v1752, 32
    %v1755 = vpop.permute.xlu0 %1754
    %v1757 = vadd.f32 %v1747, %v1755
    %v1758 = vtanh.pop %v1757
    %1760 = vrot.lane.b32.xlu0 %v1758, 64
    %v1761 = vpop.permute.xlu0 %1760
    %v1763 = vmul.f32 %v1742, %v1761
    %v1765 = vrot.slane %v1763, 2
    %1766 = vrot.lane.b32.xlu0 %v1765, 32
    %v1767 = vpop.permute.xlu0 %1766
    %v1768 = vsel %vm169, %v1767, 0
    %1770 = vmatprep.subr.mxu0 0.0
    %1771 = vmatpush1.msra.mxu0 %v69
    %1772 = vmatprep.subr.mxu0 0.0
    %1773 = vmatpush1.msra.mxu0 %v70
    %1774 = vmatprep.subr.mxu0 0.0
    %1775 = vmatpush1.msra.mxu0 %v71
    %1776 = vmatprep.subr.mxu0 0.0
    %1777 = vmatpush1.msra.mxu0 %v72
    %1778 = vmatprep.subr.mxu0 0.0
    %1779 = vmatpush1.msra.mxu0 0.0
    %1780 = vmatprep.subr.mxu0 0.0
    %1781 = vmatpush1.msra.mxu0 0.0
    %1782 = vmatprep.subr.mxu0 0.0
    %1783 = vmatpush1.msra.mxu0 0.0
    %1784 = vmatprep.subr.mxu0 0.0
    %1785 = vmatpush1.msra.mxu0 0.0
    %1786 = vmatprep.subr.mxu0 0.0
    %1787 = vmatpush1.msra.mxu0 0.0
    %1788 = vmatprep.subr.mxu0 0.0
    %1789 = vmatpush1.msra.mxu0 0.0
    %1790 = vmatprep.subr.mxu0 0.0
    %1791 = vmatpush1.msra.mxu0 0.0
    %1792 = vmatprep.subr.mxu0 0.0
    %1793 = vmatpush1.msra.mxu0 0.0
    %1794 = vmatprep.subr.mxu0 0.0
    %1795 = vmatpush1.msra.mxu0 0.0
    %1796 = vmatprep.subr.mxu0 0.0
    %1797 = vmatpush1.msra.mxu0 0.0
    %1798 = vmatprep.subr.mxu0 0.0
    %1799 = vmatpush1.msra.mxu0 0.0
    %1800 = vmatprep.subr.mxu0 0.0
    %1801 = vmatpush1.msra.mxu0 0.0
    %1802 = vmatprep.subr.mxu0 0.0
    %1803 = vmatpush1.msra.mxu0 0.0
    %1804 = vmatprep.subr.mxu0 0.0
    %1805 = vmatpush1.msra.mxu0 0.0
    %1806 = vmatprep.subr.mxu0 0.0
    %1807 = vmatpush1.msra.mxu0 0.0
    %1808 = vmatprep.subr.mxu0 0.0
    %1809 = vmatpush1.msra.mxu0 0.0
    %1810 = vmatprep.subr.mxu0 0.0
    %1811 = vmatpush1.msra.mxu0 0.0
    %1812 = vmatprep.subr.mxu0 0.0
    %1813 = vmatpush1.msra.mxu0 0.0
    %1814 = vmatprep.subr.mxu0 0.0
    %1815 = vmatpush1.msra.mxu0 0.0
    %1816 = vmatprep.subr.mxu0 0.0
    %1817 = vmatpush1.msra.mxu0 0.0
    %1818 = vmatprep.subr.mxu0 0.0
    %1819 = vmatpush1.msra.mxu0 0.0
    %1820 = vmatprep.subr.mxu0 0.0
    %1821 = vmatpush1.msra.mxu0 0.0
    %1822 = vmatprep.subr.mxu0 0.0
    %1823 = vmatpush1.msra.mxu0 0.0
    %1824 = vmatprep.subr.mxu0 0.0
    %1825 = vmatpush1.msra.mxu0 0.0
    %1826 = vmatprep.subr.mxu0 0.0
    %1827 = vmatpush1.msra.mxu0 0.0
    %1828 = vmatprep.subr.mxu0 0.0
    %1829 = vmatpush1.msra.mxu0 0.0
    %1830 = vmatprep.subr.mxu0 0.0
    %1831 = vmatpush1.msra.mxu0 0.0
    %1832 = vmatprep.subr.mxu0 0.0
    %1833 = vmatpush1.msra.mxu0 0.0
    %1834 = vmatprep.mubr.f32.mxu0 0.0
    %1835 = vmatmul.mubr.f32.gmra.mrb[0].mxu0 %v1768
    %v1836 = vpop.f32.mrb[0].mxu0
    %v1837 = vadd.f32 0.0, %v1836
    %v1838 = vpop.f32.mrb[0].mxu0
    %1839 = vdwg.mxu0
    %v1841 = vrot.slane %v1837, 4
    %v1843 = vadd.f32 %v1136, %v1841
    %v1844 = vxor.u32 %v1843, 2147483648
    %v1845 = vmul.f32 %v1844, 1.442695
    %v1846 = vpow.pop %v1845
    %v1847 = vadd.f32 %v1846, 1.0
    %v1848 = vrcp.pop %v1847
    %v1849 = vmul.f32 1.0, %v1848
    %v1850 = vtanh.pop %v1843
    %v1852 = vrot.slane %v1757, 6
    %v1854 = vmul.f32 %v1849, %v1852
    %1856 = vrot.lane.b32.xlu0 %v1850, 64
    %v1857 = vpop.permute.xlu0 %1856
    %v1859 = vmul.f32 %v1849, %v1857
    %1861 = vrot.lane.b32.xlu0 %v1859, 32
    %v1862 = vpop.permute.xlu0 %1861
    %v1864 = vadd.f32 %v1854, %v1862
    %v1865 = vtanh.pop %v1864
    %1867 = vrot.lane.b32.xlu0 %v1865, 64
    %v1868 = vpop.permute.xlu0 %1867
    %v1870 = vmul.f32 %v1849, %v1868
    %v1872 = vrot.slane %v1870, 4
    %1873 = vrot.lane.b32.xlu0 %v1872, 32
    %v1874 = vpop.permute.xlu0 %1873
    %v1875 = vsel %vm169, %v1874, 0
    %1877 = vmatprep.subr.mxu0 0.0
    %1878 = vmatpush1.msra.mxu0 %v69
    %1879 = vmatprep.subr.mxu0 0.0
    %1880 = vmatpush1.msra.mxu0 %v70
    %1881 = vmatprep.subr.mxu0 0.0
    %1882 = vmatpush1.msra.mxu0 %v71
    %1883 = vmatprep.subr.mxu0 0.0
    %1884 = vmatpush1.msra.mxu0 %v72
    %1885 = vmatprep.subr.mxu0 0.0
    %1886 = vmatpush1.msra.mxu0 0.0
    %1887 = vmatprep.subr.mxu0 0.0
    %1888 = vmatpush1.msra.mxu0 0.0
    %1889 = vmatprep.subr.mxu0 0.0
    %1890 = vmatpush1.msra.mxu0 0.0
    %1891 = vmatprep.subr.mxu0 0.0
    %1892 = vmatpush1.msra.mxu0 0.0
    %1893 = vmatprep.subr.mxu0 0.0
    %1894 = vmatpush1.msra.mxu0 0.0
    %1895 = vmatprep.subr.mxu0 0.0
    %1896 = vmatpush1.msra.mxu0 0.0
    %1897 = vmatprep.subr.mxu0 0.0
    %1898 = vmatpush1.msra.mxu0 0.0
    %1899 = vmatprep.subr.mxu0 0.0
    %1900 = vmatpush1.msra.mxu0 0.0
    %1901 = vmatprep.subr.mxu0 0.0
    %1902 = vmatpush1.msra.mxu0 0.0
    %1903 = vmatprep.subr.mxu0 0.0
    %1904 = vmatpush1.msra.mxu0 0.0
    %1905 = vmatprep.subr.mxu0 0.0
    %1906 = vmatpush1.msra.mxu0 0.0
    %1907 = vmatprep.subr.mxu0 0.0
    %1908 = vmatpush1.msra.mxu0 0.0
    %1909 = vmatprep.subr.mxu0 0.0
    %1910 = vmatpush1.msra.mxu0 0.0
    %1911 = vmatprep.subr.mxu0 0.0
    %1912 = vmatpush1.msra.mxu0 0.0
    %1913 = vmatprep.subr.mxu0 0.0
    %1914 = vmatpush1.msra.mxu0 0.0
    %1915 = vmatprep.subr.mxu0 0.0
    %1916 = vmatpush1.msra.mxu0 0.0
    %1917 = vmatprep.subr.mxu0 0.0
    %1918 = vmatpush1.msra.mxu0 0.0
    %1919 = vmatprep.subr.mxu0 0.0
    %1920 = vmatpush1.msra.mxu0 0.0
    %1921 = vmatprep.subr.mxu0 0.0
    %1922 = vmatpush1.msra.mxu0 0.0
    %1923 = vmatprep.subr.mxu0 0.0
    %1924 = vmatpush1.msra.mxu0 0.0
    %1925 = vmatprep.subr.mxu0 0.0
    %1926 = vmatpush1.msra.mxu0 0.0
    %1927 = vmatprep.subr.mxu0 0.0
    %1928 = vmatpush1.msra.mxu0 0.0
    %1929 = vmatprep.subr.mxu0 0.0
    %1930 = vmatpush1.msra.mxu0 0.0
    %1931 = vmatprep.subr.mxu0 0.0
    %1932 = vmatpush1.msra.mxu0 0.0
    %1933 = vmatprep.subr.mxu0 0.0
    %1934 = vmatpush1.msra.mxu0 0.0
    %1935 = vmatprep.subr.mxu0 0.0
    %1936 = vmatpush1.msra.mxu0 0.0
    %1937 = vmatprep.subr.mxu0 0.0
    %1938 = vmatpush1.msra.mxu0 0.0
    %1939 = vmatprep.subr.mxu0 0.0
    %1940 = vmatpush1.msra.mxu0 0.0
    %1941 = vmatprep.mubr.f32.mxu0 0.0
    %1942 = vmatmul.mubr.f32.gmra.mrb[0].mxu0 %v1875
    %v1943 = vpop.f32.mrb[0].mxu0
    %v1944 = vadd.f32 0.0, %v1943
    %v1945 = vpop.f32.mrb[0].mxu0
    %1946 = vdwg.mxu0
    %v1948 = vrot.slane %v1944, 2
    %v1950 = vadd.f32 %v1136, %v1948
    %v1951 = vxor.u32 %v1950, 2147483648
    %v1952 = vmul.f32 %v1951, 1.442695
    %v1953 = vpow.pop %v1952
    %v1954 = vadd.f32 %v1953, 1.0
    %v1955 = vrcp.pop %v1954
    %v1956 = vmul.f32 1.0, %v1955
    %v1957 = vtanh.pop %v1950
    %v1959 = vrot.slane %v1864, 6
    %v1961 = vmul.f32 %v1956, %v1959
    %1963 = vrot.lane.b32.xlu0 %v1957, 64
    %v1964 = vpop.permute.xlu0 %1963
    %v1966 = vmul.f32 %v1956, %v1964
    %1968 = vrot.lane.b32.xlu0 %v1966, 32
    %v1969 = vpop.permute.xlu0 %1968
    %v1971 = vadd.f32 %v1961, %v1969
    %v1972 = vtanh.pop %v1971
    %1974 = vrot.lane.b32.xlu0 %v1972, 64
    %v1975 = vpop.permute.xlu0 %1974
    %v1977 = vmul.f32 %v1956, %v1975
    %1979 = vrot.lane.b32.xlu0 %v1977, 32
    %v1980 = vpop.permute.xlu0 %1979
    %v1982 = vsel %vm605, %v1980, 0.0
    %1983 = vadd.xlane.f32.xlu0 %v1982
    %v1984 = vpop.xlane.xlu0 %1983
    %v1985 = vrcp.pop 32.0
    %v1986 = vmul.f32 %v1984, %v1985
    %v1987 = vsub.f32 %v1977, %v1986
    %v1988 = vmul.f32 %v1987, %v1987
    %1990 = vrot.lane.b32.xlu0 %v1988, 32
    %v1991 = vpop.permute.xlu0 %1990
    %v1993 = vsel %vm605, %v1991, 0.0
    %1994 = vadd.xlane.f32.xlu0 %v1993
    %v1995 = vpop.xlane.xlu0 %1994
    %v1996 = vmul.f32 %v1995, %v1985
    %v1997 = vadd.f32 %v1996, 1e-05
    %v1998 = vrsqrt.pop %v1997
    %v1999 = vmul.f32 %v1987, %v1998
    %v2000 = vld [vmem:[%s7] sm:$0x1]
    %v2002 = vlaneseq
    %v2003 = vshrl.u32 %v2002, 7
    %v2004 = vsub.s32 0, %v2003
    %v2005 = vrot.slane %v2000, %v2004
    %2006 = vrot.lane.b32.xlu0 %v2005, 96
    %v2007 = vpop.permute.xlu0 %2006
    %v2009 = vmul.f32 %v1999, %v2007
    %v2010 = vld [vmem:[%s8] sm:$0x1]
    %v2012 = vlaneseq
    %v2013 = vshrl.u32 %v2012, 7
    %v2014 = vsub.s32 0, %v2013
    %v2015 = vrot.slane %v2010, %v2014
    %2016 = vrot.lane.b32.xlu0 %v2015, 96
    %v2017 = vpop.permute.xlu0 %2016
    %v2019 = vadd.f32 %v2009, %v2017
    %v2020 = vmax.f32 %v2019, 0.0
    %v2021 = vld [vmem:[%s9] sm:$0xff]
    %v2022 = vld [vmem:[%s9 + $0x8] sm:$0xff]
    %v2023 = vld [vmem:[%s9 + $0x10] sm:$0xff]
    %v2024 = vld [vmem:[%s9 + $0x18] sm:$0xff]
    %v2025 = vld [vmem:[%s10] sm:$0x1]
    %v2027 = vlaneseq
    %v2028 = vshrl.u32 %v2027, 7
    %v2029 = vsub.s32 0, %v2028
    %v2030 = vrot.slane %v2025, %v2029
    %v2033 = vrot.slane %v2020, 6
    %2034 = vrot.lane.b32.xlu0 %v2033, 32
    %v2035 = vpop.permute.xlu0 %2034
    %v2036 = vsel %vm169, %v2035, 0
    %2038 = vmatprep.subr.mxu0 0.0
    %2039 = vmatpush1.msra.mxu0 %v2021
    %2040 = vmatprep.subr.mxu0 0.0
    %2041 = vmatpush1.msra.mxu0 %v2022
    %2042 = vmatprep.subr.mxu0 0.0
    %2043 = vmatpush1.msra.mxu0 %v2023
    %2044 = vmatprep.subr.mxu0 0.0
    %2045 = vmatpush1.msra.mxu0 %v2024
    %2046 = vmatprep.subr.mxu0 0.0
    %2047 = vmatpush1.msra.mxu0 0.0
    %2048 = vmatprep.subr.mxu0 0.0
    %2049 = vmatpush1.msra.mxu0 0.0
    %2050 = vmatprep.subr.mxu0 0.0
    %2051 = vmatpush1.msra.mxu0 0.0
    %2052 = vmatprep.subr.mxu0 0.0
    %2053 = vmatpush1.msra.mxu0 0.0
    %2054 = vmatprep.subr.mxu0 0.0
    %2055 = vmatpush1.msra.mxu0 0.0
    %2056 = vmatprep.subr.mxu0 0.0
    %2057 = vmatpush1.msra.mxu0 0.0
    %2058 = vmatprep.subr.mxu0 0.0
    %2059 = vmatpush1.msra.mxu0 0.0
    %2060 = vmatprep.subr.mxu0 0.0
    %2061 = vmatpush1.msra.mxu0 0.0
    %2062 = vmatprep.subr.mxu0 0.0
    %2063 = vmatpush1.msra.mxu0 0.0
    %2064 = vmatprep.subr.mxu0 0.0
    %2065 = vmatpush1.msra.mxu0 0.0
    %2066 = vmatprep.subr.mxu0 0.0
    %2067 = vmatpush1.msra.mxu0 0.0
    %2068 = vmatprep.subr.mxu0 0.0
    %2069 = vmatpush1.msra.mxu0 0.0
    %2070 = vmatprep.subr.mxu0 0.0
    %2071 = vmatpush1.msra.mxu0 0.0
    %2072 = vmatprep.subr.mxu0 0.0
    %2073 = vmatpush1.msra.mxu0 0.0
    %2074 = vmatprep.subr.mxu0 0.0
    %2075 = vmatpush1.msra.mxu0 0.0
    %2076 = vmatprep.subr.mxu0 0.0
    %2077 = vmatpush1.msra.mxu0 0.0
    %2078 = vmatprep.subr.mxu0 0.0
    %2079 = vmatpush1.msra.mxu0 0.0
    %2080 = vmatprep.subr.mxu0 0.0
    %2081 = vmatpush1.msra.mxu0 0.0
    %2082 = vmatprep.subr.mxu0 0.0
    %2083 = vmatpush1.msra.mxu0 0.0
    %2084 = vmatprep.subr.mxu0 0.0
    %2085 = vmatpush1.msra.mxu0 0.0
    %2086 = vmatprep.subr.mxu0 0.0
    %2087 = vmatpush1.msra.mxu0 0.0
    %2088 = vmatprep.subr.mxu0 0.0
    %2089 = vmatpush1.msra.mxu0 0.0
    %2090 = vmatprep.subr.mxu0 0.0
    %2091 = vmatpush1.msra.mxu0 0.0
    %2092 = vmatprep.subr.mxu0 0.0
    %2093 = vmatpush1.msra.mxu0 0.0
    %2094 = vmatprep.subr.mxu0 0.0
    %2095 = vmatpush1.msra.mxu0 0.0
    %2096 = vmatprep.subr.mxu0 0.0
    %2097 = vmatpush1.msra.mxu0 0.0
    %2098 = vmatprep.subr.mxu0 0.0
    %2099 = vmatpush1.msra.mxu0 0.0
    %2100 = vmatprep.subr.mxu0 0.0
    %2101 = vmatpush1.msra.mxu0 0.0
    %2102 = vmatprep.mubr.f32.mxu0 0.0
    %2103 = vmatmul.mubr.f32.gmra.mrb[0].mxu0 %v2036
    %v2104 = vpop.f32.mrb[0].mxu0
    %v2105 = vadd.f32 %v2030, %v2104
    %v2106 = vpop.f32.mrb[0].mxu0
    %2107 = vdwg.mxu0
    %vm2108 = vcmask 58368
    %2109 = vst.msk [vmem:[#allocation8] sm:$0x3] %vm2108, %v2105
    // Predicated region
    $region54: #{tpu_custom_call.1} parent=1 // pred_check
      _
    $region55: #{tpu_custom_call.1} parent=1 // pred_check_branch
      %2111 = sbr.rel (0) target = $region57
    $region56: #{tpu_custom_call.1} parent=1 // pred_region
      %s2113 = ssub.s32 32, 32
      %2114 = vsyncadd [#allocation5], %s2113
      %s2116 = sshll.u32 [#allocation8], 4
      %s2117 = int_to_ptr.vmem [resolvable:$true] %s2116
      %2119 = dma.vmem_to_hbm [thread:$0]  %s2117, 32, %s11, [#allocation5]
    $region57: #{tpu_custom_call.1} parent=1 // pred_fallthru
      _
    // Predicated region
    $region58: #{tpu_custom_call.1} parent=1 // pred_check
      _
    $region59: #{tpu_custom_call.1} parent=1 // pred_check_branch
      %2121 = sbr.rel (0) target = $region61
    $region60: #{tpu_custom_call.1} parent=1 // pred_region
      %2122 = dma.done [#allocation5], 32
    $region61: #{tpu_custom_call.1} parent=1 // pred_fallthru
      _
    %2123 = vsyncpa [#allocation4], 1
    %2124 = vsyncpa [#allocation7], 1
    %2125 = vsyncpa [#allocation5], 1

</llo_original>
